<compile_context>
chip_gen: v6e
topology: v6e:2x2x1
jax: 0.10.0
libtpu: 0.0.40
codegen_flags: <defaults>
</compile_context>

<pallas_src>
import numpy as np
import jax
import jax.numpy as jnp
from jax.experimental import pallas as pl
from jax.experimental.pallas import tpu as pltpu

EPS = 1e-5  # nn.LayerNorm default


# ----------------------------------------------------------------------------- kernel
def nonlinear_ext_kernel(x_ref, wa_ref, btf_ref,
                         w2m_ref, b2a_ref, w2b_ref, b2b_ref,
                         g1_ref, be1_ref,
                         w3a_ref, b3a_ref, w3b_ref, b3b_ref,
                         g2_ref, be2_ref,
                         out_ref):
    Bt, C, D = x_ref.shape
    xf = x_ref[...].reshape(Bt * C, D)      # free collapse when C%8==0 and D%128==0

    # --- fused same-LHS matmul: [temporal+frequency | x-half of proj2's first Linear]
    fused = jnp.dot(xf, wa_ref[...], preferred_element_type=jnp.float32)   # (Bt*C, 2D)
    nl = jnp.tanh(fused[:, :D] + btf_ref[...])                             # non_linear
    x2 = fused[:, D:]                                                      # x @ W2a[:, :D].T

    # --- softmax over channels (dim=1) + self-weighted mean (simplified form) ---
    nl3 = nl.reshape(Bt, C, D)
    m = jnp.max(nl3, axis=1, keepdims=True)
    e = jnp.exp(nl3 - m)
    num = jnp.sum(nl3 * e, axis=1)                          # (Bt, D)
    den = jnp.sum(e, axis=1)                                # (Bt, D), >= 1
    wm = num * pl.reciprocal(den, approx=False)             # (Bt, D)

    # --- proj2: weighted-mean half of first Linear done once per batch row ---
    wm2 = jnp.dot(wm, w2m_ref[...], preferred_element_type=jnp.float32)    # (Bt, D)
    h2 = jnp.tanh(
        (x2.reshape(Bt, C, D) + wm2.reshape(Bt, 1, D) + b2a_ref[...])
        .reshape(Bt * C, D))
    cat_out = jnp.dot(h2, w2b_ref[...], preferred_element_type=jnp.float32) + b2b_ref[...]

    # --- norm1(non_linear + cat) ---
    y1 = nl + cat_out
    mu1 = jnp.mean(y1, axis=-1, keepdims=True)
    var1 = jnp.mean(jnp.square(y1 - mu1), axis=-1, keepdims=True)
    o1 = (y1 - mu1) * jax.lax.rsqrt(var1 + EPS) * g1_ref[...] + be1_ref[...]

    # --- proj3: Linear, Tanh, (Dropout = identity in eval), Linear ---
    h3 = jnp.tanh(jnp.dot(o1, w3a_ref[...], preferred_element_type=jnp.float32) + b3a_ref[...])
    o3 = jnp.dot(h3, w3b_ref[...], preferred_element_type=jnp.float32) + b3b_ref[...]

    # --- norm2(output1 + output2) ---
    y2 = o1 + o3
    mu2 = jnp.mean(y2, axis=-1, keepdims=True)
    var2 = jnp.mean(jnp.square(y2 - mu2), axis=-1, keepdims=True)
    o2 = (y2 - mu2) * jax.lax.rsqrt(var2 + EPS) * g2_ref[...] + be2_ref[...]

    out_ref[...] = o2.reshape(Bt, C, D)


# ----------------------------------------------------------------------------- wrapper
PARAM_ORDER = ("w_a", "b_tf", "w2_m", "b2a", "w2b", "b2b",
               "g1", "be1", "w3a", "b3a", "w3b", "b3b", "g2", "be2")


def _pick_batch_tile(B, C, D, act_budget_bytes=8 * 1024 * 1024):
    # ~12 live (Bt*C, D) f32 temporaries per block; stay well under VMEM after the
    # resident weights (~6*D^2*4B) and double-buffered x/out tiles (v7x: 64 MiB total).
    bt = B
    while bt > 1 and (12 * bt * C * D * 4 > act_budget_bytes or B % bt != 0):
        bt -= 1
    return max(bt, 1)


def non_linear_ext(x, params, *, bt=None):
    """x: (B, C, D) float32.  params: dict of kernel-ready arrays (see build_params)."""
    B, C, D = x.shape
    if bt is None:
        bt = _pick_batch_tile(B, C, D)
    assert B % bt == 0, "batch tile must divide batch"
    weights = tuple(params[k] for k in PARAM_ORDER)

    in_specs = [pl.BlockSpec((bt, C, D), lambda b: (b, 0, 0))]
    # full-shape blocks + constant index_map => weights resident in VMEM, DMA'd once
    in_specs += [pl.BlockSpec(w.shape, lambda b: (0, 0)) for w in weights]
    out_spec = pl.BlockSpec((bt, C, D), lambda b: (b, 0, 0))

    matmul_flops = (2 * B * C * D * (2 * D)        # fused xf @ (D,2D)
                    + 3 * (2 * B * C * D * D)      # w2b, w3a, w3b
                    + 2 * B * D * D)               # wm @ w2m (once per batch row)
    bytes_accessed = int(2 * x.size * 4 + sum(int(w.size) * 4 for w in weights))
    cost = pl.CostEstimate(flops=int(matmul_flops),
                           transcendentals=int(4 * B * C * D),   # 3x tanh + 1x exp
                           bytes_accessed=bytes_accessed)

    return pl.pallas_call(
        nonlinear_ext_kernel,
        out_shape=jax.ShapeDtypeStruct((B, C, D), jnp.float32),
        grid=(B // bt,),
        in_specs=in_specs,
        out_specs=out_spec,
        compiler_params=pltpu.CompilerParams(
            dimension_semantics=("parallel",),          # megacore sharding on v7x
            vmem_limit_bytes=48 * 1024 * 1024),
        cost_estimate=cost,
    )(x, *weights)


# ----------------------------------------------------------------------------- params
def init_linear(rng, out_f, in_f):
    bound = 1.0 / np.sqrt(in_f)
    W = rng.uniform(-bound, bound, size=(out_f, in_f)).astype(np.float32)
    b = rng.uniform(-bound, bound, size=(out_f,)).astype(np.float32)
    return W, b


def build_params(d_model, seed=0):
    rng = np.random.default_rng(seed)
    Fr = d_model // 2 + 1

    # temporal_proj: Linear(d, d)
    Wt, b_t = init_linear(rng, d_model, d_model)
    # freq_proj: complex Linear(F, F)
    Wc_r, bc_r = init_linear(rng, Fr, Fr)
    Wc_i, bc_i = init_linear(rng, Fr, Fr)
    Wc = (Wc_r + 1j * Wc_i).astype(np.complex64)
    bc = (bc_r + 1j * bc_i).astype(np.complex64)
    # Non_Linear_porj2: Linear(2d, d), Linear(d, d)
    W2a, b2a = init_linear(rng, d_model, 2 * d_model)
    W2b, b2b = init_linear(rng, d_model, d_model)
    # Non_Linear_porj3: Linear(d, d), Linear(d, d)
    W3a, b3a = init_linear(rng, d_model, d_model)
    W3b, b3b = init_linear(rng, d_model, d_model)
    # LayerNorms (defaults)
    g1 = np.ones((d_model,), np.float32); be1 = np.zeros((d_model,), np.float32)
    g2 = np.ones((d_model,), np.float32); be2 = np.zeros((d_model,), np.float32)

    raw = dict(Wt=Wt, bt=b_t, Wc=Wc, bc=bc, W2a=W2a, b2a=b2a, W2b=W2b, b2b=b2b,
               W3a=W3a, b3a=b3a, W3b=W3b, b3b=b3b,
               g1=g1, be1=be1, g2=g2, be2=be2)

    # ---- fold FLinear (irfft . Wc . rfft) into a real (d, d) matrix (exact, even d),
    #      computed host-side with numpy (keeps all complex math off the TPU).
    I = np.eye(d_model, dtype=np.float64)
    M_freq = np.real(
        np.fft.irfft(np.fft.rfft(I, axis=-1) @ Wc.T.astype(np.complex128),
                     n=d_model, axis=-1)
    ).astype(np.float32)                                       # y = x @ M_freq
    b_freq = np.real(np.fft.irfft(bc.astype(np.complex128), n=d_model)).astype(np.float32)

    w_tf = Wt.T + M_freq                                       # fused TF_Linear weight
    kp = dict(
        # fused same-LHS weight: [TF_Linear | x-half of proj2 first Linear]  -> (d, 2d)
        w_a=np.concatenate([w_tf, W2a[:, :d_model].T], axis=1),
        b_tf=(b_t + b_freq)[None, :],
        w2_m=W2a[:, d_model:].T,                               # weighted-mean half
        b2a=b2a[None, :], w2b=W2b.T, b2b=b2b[None, :],
        g1=g1[None, :], be1=be1[None, :],
        w3a=W3a.T, b3a=b3a[None, :],
        w3b=W3b.T, b3b=b3b[None, :],
        g2=g2[None, :], be2=be2[None, :],
    )
    kernel_params = {k: jnp.asarray(v, jnp.float32) for k, v in kp.items()}
    return raw, kernel_params


# ----------------------------------------------------------------------------- numpy reference
def reference_forward_np(x, p):
    """Faithful numpy port of Non_Linear_ext.forward (eval mode), float64 internally."""
    x = x.astype(np.float64)
    d = x.shape[-1]

    def layernorm(y, g, b):
        mu = y.mean(-1, keepdims=True)
        var = ((y - mu) ** 2).mean(-1, keepdims=True)
        return (y - mu) / np.sqrt(var + EPS) * g + b

    temporal = x @ p["Wt"].T.astype(np.float64) + p["bt"]
    x_fft = np.fft.rfft(x, axis=-1)
    x_fft_hat = x_fft @ p["Wc"].T.astype(np.complex128) + p["bc"].astype(np.complex128)
    freq = np.real(np.fft.irfft(x_fft_hat, n=d, axis=-1))
    non_linear = np.tanh(temporal + freq)

    e = np.exp(non_linear - non_linear.max(axis=1, keepdims=True))
    w = e / e.sum(axis=1, keepdims=True)
    wm = np.sum(non_linear * w, axis=1, keepdims=True)
    wm = np.broadcast_to(wm, x.shape)

    cat = np.concatenate([x, wm], axis=-1)
    cat = np.tanh(cat @ p["W2a"].T.astype(np.float64) + p["b2a"]) @ p["W2b"].T + p["b2b"]
    out1 = layernorm(non_linear + cat, p["g1"], p["be1"])
    out2 = np.tanh(out1 @ p["W3a"].T.astype(np.float64) + p["b3a"]) @ p["W3b"].T + p["b3b"]
    return layernorm(out1 + out2, p["g2"], p["be2"]).astype(np.float32)


# ----------------------------------------------------------------------------- main
if __name__ == "__main__":
    # Lane-dense config: d_model multiple of 128, channels multiple of 8 (sublanes).
    B, C, D = 4, 8, 128
    key = jax.random.PRNGKey(0)
    x = jax.random.normal(key, (B, C, D), jnp.float32)

    raw_params, kernel_params = build_params(D, seed=0)

    out = jax.block_until_ready(non_linear_ext(x, kernel_params, bt=2))  # grid=(2,)
    ref = reference_forward_np(np.asarray(x), raw_params)
    np.testing.assert_allclose(np.asarray(out), ref, rtol=1e-4, atol=1e-4)

    print("KERNEL_OK")
</pallas_src>

<mosaic_0001>
module attributes {stable_mosaic.version = 11 : i64} {
  func.func @nonlinear_ext_kernel(%arg0: i32, %arg1: memref<2x8x128xf32, #tpu.memory_space<vmem>>, %arg2: memref<128x256xf32, #tpu.memory_space<vmem>>, %arg3: memref<1x128xf32, #tpu.memory_space<vmem>>, %arg4: memref<128x128xf32, #tpu.memory_space<vmem>>, %arg5: memref<1x128xf32, #tpu.memory_space<vmem>>, %arg6: memref<128x128xf32, #tpu.memory_space<vmem>>, %arg7: memref<1x128xf32, #tpu.memory_space<vmem>>, %arg8: memref<1x128xf32, #tpu.memory_space<vmem>>, %arg9: memref<1x128xf32, #tpu.memory_space<vmem>>, %arg10: memref<128x128xf32, #tpu.memory_space<vmem>>, %arg11: memref<1x128xf32, #tpu.memory_space<vmem>>, %arg12: memref<128x128xf32, #tpu.memory_space<vmem>>, %arg13: memref<1x128xf32, #tpu.memory_space<vmem>>, %arg14: memref<1x128xf32, #tpu.memory_space<vmem>>, %arg15: memref<1x128xf32, #tpu.memory_space<vmem>>, %arg16: memref<2x8x128xf32, #tpu.memory_space<vmem>>) attributes {dimension_semantics = [#tpu.dimension_semantics<parallel>], iteration_bounds = array<i64: 2>, scalar_prefetch = 0 : i64, scratch_operands = 0 : i64, tpu.core_type = #tpu.core_type<tc>, window_params = [{transform_indices = @transform_0, window_bounds = array<i64: 2, 8, 128>}, {pipeline_mode = #tpu.pipeline_mode<synchronous>, transform_indices = @transform_1, window_bounds = array<i64: 128, 256>}, {pipeline_mode = #tpu.pipeline_mode<synchronous>, transform_indices = @transform_2, window_bounds = array<i64: 1, 128>}, {pipeline_mode = #tpu.pipeline_mode<synchronous>, transform_indices = @transform_3, window_bounds = array<i64: 128, 128>}, {pipeline_mode = #tpu.pipeline_mode<synchronous>, transform_indices = @transform_4, window_bounds = array<i64: 1, 128>}, {pipeline_mode = #tpu.pipeline_mode<synchronous>, transform_indices = @transform_5, window_bounds = array<i64: 128, 128>}, {pipeline_mode = #tpu.pipeline_mode<synchronous>, transform_indices = @transform_6, window_bounds = array<i64: 1, 128>}, {pipeline_mode = #tpu.pipeline_mode<synchronous>, transform_indices = @transform_7, window_bounds = array<i64: 1, 128>}, {pipeline_mode = #tpu.pipeline_mode<synchronous>, transform_indices = @transform_8, window_bounds = array<i64: 1, 128>}, {pipeline_mode = #tpu.pipeline_mode<synchronous>, transform_indices = @transform_9, window_bounds = array<i64: 128, 128>}, {pipeline_mode = #tpu.pipeline_mode<synchronous>, transform_indices = @transform_10, window_bounds = array<i64: 1, 128>}, {pipeline_mode = #tpu.pipeline_mode<synchronous>, transform_indices = @transform_11, window_bounds = array<i64: 128, 128>}, {pipeline_mode = #tpu.pipeline_mode<synchronous>, transform_indices = @transform_12, window_bounds = array<i64: 1, 128>}, {pipeline_mode = #tpu.pipeline_mode<synchronous>, transform_indices = @transform_13, window_bounds = array<i64: 1, 128>}, {pipeline_mode = #tpu.pipeline_mode<synchronous>, transform_indices = @transform_14, window_bounds = array<i64: 1, 128>}, {transform_indices = @transform_15, window_bounds = array<i64: 2, 8, 128>}]} {
    %c0 = arith.constant 0 : index
    %c0_0 = arith.constant 0 : index
    %c0_1 = arith.constant 0 : index
    %0 = vector.load %arg1[%c0, %c0_0, %c0_1] : memref<2x8x128xf32, #tpu.memory_space<vmem>>, vector<2x8x128xf32>
    %1 = vector.shape_cast %0 : vector<2x8x128xf32> to vector<16x128xf32>
    %c0_2 = arith.constant 0 : index
    %c0_3 = arith.constant 0 : index
    %2 = vector.load %arg2[%c0_2, %c0_3] : memref<128x256xf32, #tpu.memory_space<vmem>>, vector<128x256xf32>
    %cst = arith.constant dense<0.000000e+00> : vector<16x256xf32>
    %3 = tpu.matmul %1, %2, %cst {dimension_numbers = #tpu.dot_dimension_numbers<[1], [0], [0], [1], [0, 0, 1, 1], [], []>} : vector<16x128xf32>, vector<128x256xf32>, vector<16x256xf32> -> vector<16x256xf32>
    %4 = vector.extract_strided_slice %3 {offsets = [0, 0], sizes = [16, 128], strides = [1, 1]} : vector<16x256xf32> to vector<16x128xf32>
    %c0_4 = arith.constant 0 : index
    %c0_5 = arith.constant 0 : index
    %5 = vector.load %arg3[%c0_4, %c0_5] : memref<1x128xf32, #tpu.memory_space<vmem>>, vector<1x128xf32>
    %6 = vector.broadcast %5 : vector<1x128xf32> to vector<16x128xf32>
    %7 = arith.addf %4, %6 : vector<16x128xf32>
    %8 = math.tanh %7 : vector<16x128xf32>
    %9 = vector.extract_strided_slice %3 {offsets = [0, 128], sizes = [16, 128], strides = [1, 1]} : vector<16x256xf32> to vector<16x128xf32>
    %10 = vector.shape_cast %8 : vector<16x128xf32> to vector<2x8x128xf32>
    %cst_6 = arith.constant dense<0xFF800000> : vector<2x128xf32>
    %11 = vector.multi_reduction <maximumf>, %10, %cst_6 [1] : vector<2x8x128xf32> to vector<2x128xf32>
    %12 = vector.shape_cast %11 : vector<2x128xf32> to vector<2x1x128xf32>
    %13 = vector.broadcast %12 : vector<2x1x128xf32> to vector<2x8x128xf32>
    %14 = arith.subf %10, %13 : vector<2x8x128xf32>
    %15 = math.exp %14 : vector<2x8x128xf32>
    %16 = arith.mulf %10, %15 : vector<2x8x128xf32>
    %cst_7 = arith.constant dense<0.000000e+00> : vector<2x128xf32>
    %17 = vector.multi_reduction <add>, %16, %cst_7 [1] : vector<2x8x128xf32> to vector<2x128xf32>
    %cst_8 = arith.constant dense<0.000000e+00> : vector<2x128xf32>
    %18 = vector.multi_reduction <add>, %15, %cst_8 [1] : vector<2x8x128xf32> to vector<2x128xf32>
    %19 = tpu.reciprocal %18 : vector<2x128xf32> -> vector<2x128xf32>
    %20 = arith.mulf %17, %19 : vector<2x128xf32>
    %c0_9 = arith.constant 0 : index
    %c0_10 = arith.constant 0 : index
    %21 = vector.load %arg4[%c0_9, %c0_10] : memref<128x128xf32, #tpu.memory_space<vmem>>, vector<128x128xf32>
    %cst_11 = arith.constant dense<0.000000e+00> : vector<2x128xf32>
    %22 = tpu.matmul %20, %21, %cst_11 {dimension_numbers = #tpu.dot_dimension_numbers<[1], [0], [0], [1], [0, 0, 1, 1], [], []>} : vector<2x128xf32>, vector<128x128xf32>, vector<2x128xf32> -> vector<2x128xf32>
    %23 = vector.shape_cast %9 : vector<16x128xf32> to vector<2x8x128xf32>
    %24 = vector.shape_cast %22 : vector<2x128xf32> to vector<2x1x128xf32>
    %25 = vector.broadcast %24 : vector<2x1x128xf32> to vector<2x8x128xf32>
    %26 = arith.addf %23, %25 : vector<2x8x128xf32>
    %c0_12 = arith.constant 0 : index
    %c0_13 = arith.constant 0 : index
    %27 = vector.load %arg5[%c0_12, %c0_13] : memref<1x128xf32, #tpu.memory_space<vmem>>, vector<1x128xf32>
    %28 = vector.shape_cast %27 : vector<1x128xf32> to vector<1x1x128xf32>
    %29 = vector.broadcast %28 : vector<1x1x128xf32> to vector<2x8x128xf32>
    %30 = arith.addf %26, %29 : vector<2x8x128xf32>
    %31 = vector.shape_cast %30 : vector<2x8x128xf32> to vector<16x128xf32>
    %32 = math.tanh %31 : vector<16x128xf32>
    %c0_14 = arith.constant 0 : index
    %c0_15 = arith.constant 0 : index
    %33 = vector.load %arg6[%c0_14, %c0_15] : memref<128x128xf32, #tpu.memory_space<vmem>>, vector<128x128xf32>
    %cst_16 = arith.constant dense<0.000000e+00> : vector<16x128xf32>
    %34 = tpu.matmul %32, %33, %cst_16 {dimension_numbers = #tpu.dot_dimension_numbers<[1], [0], [0], [1], [0, 0, 1, 1], [], []>} : vector<16x128xf32>, vector<128x128xf32>, vector<16x128xf32> -> vector<16x128xf32>
    %c0_17 = arith.constant 0 : index
    %c0_18 = arith.constant 0 : index
    %35 = vector.load %arg7[%c0_17, %c0_18] : memref<1x128xf32, #tpu.memory_space<vmem>>, vector<1x128xf32>
    %36 = vector.broadcast %35 : vector<1x128xf32> to vector<16x128xf32>
    %37 = arith.addf %34, %36 : vector<16x128xf32>
    %38 = arith.addf %8, %37 : vector<16x128xf32>
    %cst_19 = arith.constant dense<0.000000e+00> : vector<16xf32>
    %39 = vector.multi_reduction <add>, %38, %cst_19 [1] : vector<16x128xf32> to vector<16xf32>
    %40 = vector.shape_cast %39 : vector<16xf32> to vector<16x1xf32>
    %cst_20 = arith.constant 1.280000e+02 : f32
    %41 = vector.broadcast %cst_20 : f32 to vector<16x1xf32>
    %42 = arith.divf %40, %41 : vector<16x1xf32>
    %43 = vector.broadcast %42 : vector<16x1xf32> to vector<16x128xf32>
    %44 = arith.subf %38, %43 : vector<16x128xf32>
    %45 = arith.mulf %44, %44 : vector<16x128xf32>
    %cst_21 = arith.constant dense<0.000000e+00> : vector<16xf32>
    %46 = vector.multi_reduction <add>, %45, %cst_21 [1] : vector<16x128xf32> to vector<16xf32>
    %47 = vector.shape_cast %46 : vector<16xf32> to vector<16x1xf32>
    %cst_22 = arith.constant 1.280000e+02 : f32
    %48 = vector.broadcast %cst_22 : f32 to vector<16x1xf32>
    %49 = arith.divf %47, %48 : vector<16x1xf32>
    %50 = vector.broadcast %42 : vector<16x1xf32> to vector<16x128xf32>
    %51 = arith.subf %38, %50 : vector<16x128xf32>
    %cst_23 = arith.constant 9.99999974E-6 : f32
    %52 = vector.broadcast %cst_23 : f32 to vector<16x1xf32>
    %53 = arith.addf %49, %52 : vector<16x1xf32>
    %54 = math.rsqrt %53 : vector<16x1xf32>
    %55 = vector.broadcast %54 : vector<16x1xf32> to vector<16x128xf32>
    %56 = arith.mulf %51, %55 : vector<16x128xf32>
    %c0_24 = arith.constant 0 : index
    %c0_25 = arith.constant 0 : index
    %57 = vector.load %arg8[%c0_24, %c0_25] : memref<1x128xf32, #tpu.memory_space<vmem>>, vector<1x128xf32>
    %58 = vector.broadcast %57 : vector<1x128xf32> to vector<16x128xf32>
    %59 = arith.mulf %56, %58 : vector<16x128xf32>
    %c0_26 = arith.constant 0 : index
    %c0_27 = arith.constant 0 : index
    %60 = vector.load %arg9[%c0_26, %c0_27] : memref<1x128xf32, #tpu.memory_space<vmem>>, vector<1x128xf32>
    %61 = vector.broadcast %60 : vector<1x128xf32> to vector<16x128xf32>
    %62 = arith.addf %59, %61 : vector<16x128xf32>
    %c0_28 = arith.constant 0 : index
    %c0_29 = arith.constant 0 : index
    %63 = vector.load %arg10[%c0_28, %c0_29] : memref<128x128xf32, #tpu.memory_space<vmem>>, vector<128x128xf32>
    %cst_30 = arith.constant dense<0.000000e+00> : vector<16x128xf32>
    %64 = tpu.matmul %62, %63, %cst_30 {dimension_numbers = #tpu.dot_dimension_numbers<[1], [0], [0], [1], [0, 0, 1, 1], [], []>} : vector<16x128xf32>, vector<128x128xf32>, vector<16x128xf32> -> vector<16x128xf32>
    %c0_31 = arith.constant 0 : index
    %c0_32 = arith.constant 0 : index
    %65 = vector.load %arg11[%c0_31, %c0_32] : memref<1x128xf32, #tpu.memory_space<vmem>>, vector<1x128xf32>
    %66 = vector.broadcast %65 : vector<1x128xf32> to vector<16x128xf32>
    %67 = arith.addf %64, %66 : vector<16x128xf32>
    %68 = math.tanh %67 : vector<16x128xf32>
    %c0_33 = arith.constant 0 : index
    %c0_34 = arith.constant 0 : index
    %69 = vector.load %arg12[%c0_33, %c0_34] : memref<128x128xf32, #tpu.memory_space<vmem>>, vector<128x128xf32>
    %cst_35 = arith.constant dense<0.000000e+00> : vector<16x128xf32>
    %70 = tpu.matmul %68, %69, %cst_35 {dimension_numbers = #tpu.dot_dimension_numbers<[1], [0], [0], [1], [0, 0, 1, 1], [], []>} : vector<16x128xf32>, vector<128x128xf32>, vector<16x128xf32> -> vector<16x128xf32>
    %c0_36 = arith.constant 0 : index
    %c0_37 = arith.constant 0 : index
    %71 = vector.load %arg13[%c0_36, %c0_37] : memref<1x128xf32, #tpu.memory_space<vmem>>, vector<1x128xf32>
    %72 = vector.broadcast %71 : vector<1x128xf32> to vector<16x128xf32>
    %73 = arith.addf %70, %72 : vector<16x128xf32>
    %74 = arith.addf %62, %73 : vector<16x128xf32>
    %cst_38 = arith.constant dense<0.000000e+00> : vector<16xf32>
    %75 = vector.multi_reduction <add>, %74, %cst_38 [1] : vector<16x128xf32> to vector<16xf32>
    %76 = vector.shape_cast %75 : vector<16xf32> to vector<16x1xf32>
    %cst_39 = arith.constant 1.280000e+02 : f32
    %77 = vector.broadcast %cst_39 : f32 to vector<16x1xf32>
    %78 = arith.divf %76, %77 : vector<16x1xf32>
    %79 = vector.broadcast %78 : vector<16x1xf32> to vector<16x128xf32>
    %80 = arith.subf %74, %79 : vector<16x128xf32>
    %81 = arith.mulf %80, %80 : vector<16x128xf32>
    %cst_40 = arith.constant dense<0.000000e+00> : vector<16xf32>
    %82 = vector.multi_reduction <add>, %81, %cst_40 [1] : vector<16x128xf32> to vector<16xf32>
    %83 = vector.shape_cast %82 : vector<16xf32> to vector<16x1xf32>
    %cst_41 = arith.constant 1.280000e+02 : f32
    %84 = vector.broadcast %cst_41 : f32 to vector<16x1xf32>
    %85 = arith.divf %83, %84 : vector<16x1xf32>
    %86 = vector.broadcast %78 : vector<16x1xf32> to vector<16x128xf32>
    %87 = arith.subf %74, %86 : vector<16x128xf32>
    %cst_42 = arith.constant 9.99999974E-6 : f32
    %88 = vector.broadcast %cst_42 : f32 to vector<16x1xf32>
    %89 = arith.addf %85, %88 : vector<16x1xf32>
    %90 = math.rsqrt %89 : vector<16x1xf32>
    %91 = vector.broadcast %90 : vector<16x1xf32> to vector<16x128xf32>
    %92 = arith.mulf %87, %91 : vector<16x128xf32>
    %c0_43 = arith.constant 0 : index
    %c0_44 = arith.constant 0 : index
    %93 = vector.load %arg14[%c0_43, %c0_44] : memref<1x128xf32, #tpu.memory_space<vmem>>, vector<1x128xf32>
    %94 = vector.broadcast %93 : vector<1x128xf32> to vector<16x128xf32>
    %95 = arith.mulf %92, %94 : vector<16x128xf32>
    %c0_45 = arith.constant 0 : index
    %c0_46 = arith.constant 0 : index
    %96 = vector.load %arg15[%c0_45, %c0_46] : memref<1x128xf32, #tpu.memory_space<vmem>>, vector<1x128xf32>
    %97 = vector.broadcast %96 : vector<1x128xf32> to vector<16x128xf32>
    %98 = arith.addf %95, %97 : vector<16x128xf32>
    %99 = vector.shape_cast %98 : vector<16x128xf32> to vector<2x8x128xf32>
    %c0_47 = arith.constant 0 : index
    %c0_48 = arith.constant 0 : index
    %c0_49 = arith.constant 0 : index
    %100 = vector.load %arg16[%c0_47, %c0_48, %c0_49] : memref<2x8x128xf32, #tpu.memory_space<vmem>>, vector<2x8x128xf32>
    tpu.vector_store %arg16[%c0_47, %c0_48, %c0_49], %99 {strides = array<i32>} : memref<2x8x128xf32, #tpu.memory_space<vmem>>, vector<2x8x128xf32>,
    return
  }
  func.func @transform_0(%arg0: i32) -> (i32, i32, i32) {
    %c0_i32 = arith.constant 0 : i32
    %c0_i32_0 = arith.constant 0 : i32
    %c0_i32_1 = arith.constant 0 : i32
    return %arg0, %c0_i32, %c0_i32_0 : i32, i32, i32
  }
  func.func @transform_1(%arg0: i32) -> (i32, i32) {
    %c0_i32 = arith.constant 0 : i32
    %c0_i32_0 = arith.constant 0 : i32
    %c0_i32_1 = arith.constant 0 : i32
    return %c0_i32, %c0_i32_0 : i32, i32
  }
  func.func @transform_2(%arg0: i32) -> (i32, i32) {
    %c0_i32 = arith.constant 0 : i32
    %c0_i32_0 = arith.constant 0 : i32
    %c0_i32_1 = arith.constant 0 : i32
    return %c0_i32, %c0_i32_0 : i32, i32
  }
  func.func @transform_3(%arg0: i32) -> (i32, i32) {
    %c0_i32 = arith.constant 0 : i32
    %c0_i32_0 = arith.constant 0 : i32
    %c0_i32_1 = arith.constant 0 : i32
    return %c0_i32, %c0_i32_0 : i32, i32
  }
  func.func @transform_4(%arg0: i32) -> (i32, i32) {
    %c0_i32 = arith.constant 0 : i32
    %c0_i32_0 = arith.constant 0 : i32
    %c0_i32_1 = arith.constant 0 : i32
    return %c0_i32, %c0_i32_0 : i32, i32
  }
  func.func @transform_5(%arg0: i32) -> (i32, i32) {
    %c0_i32 = arith.constant 0 : i32
    %c0_i32_0 = arith.constant 0 : i32
    %c0_i32_1 = arith.constant 0 : i32
    return %c0_i32, %c0_i32_0 : i32, i32
  }
  func.func @transform_6(%arg0: i32) -> (i32, i32) {
    %c0_i32 = arith.constant 0 : i32
    %c0_i32_0 = arith.constant 0 : i32
    %c0_i32_1 = arith.constant 0 : i32
    return %c0_i32, %c0_i32_0 : i32, i32
  }
  func.func @transform_7(%arg0: i32) -> (i32, i32) {
    %c0_i32 = arith.constant 0 : i32
    %c0_i32_0 = arith.constant 0 : i32
    %c0_i32_1 = arith.constant 0 : i32
    return %c0_i32, %c0_i32_0 : i32, i32
  }
  func.func @transform_8(%arg0: i32) -> (i32, i32) {
    %c0_i32 = arith.constant 0 : i32
    %c0_i32_0 = arith.constant 0 : i32
    %c0_i32_1 = arith.constant 0 : i32
    return %c0_i32, %c0_i32_0 : i32, i32
  }
  func.func @transform_9(%arg0: i32) -> (i32, i32) {
    %c0_i32 = arith.constant 0 : i32
    %c0_i32_0 = arith.constant 0 : i32
    %c0_i32_1 = arith.constant 0 : i32
    return %c0_i32, %c0_i32_0 : i32, i32
  }
  func.func @transform_10(%arg0: i32) -> (i32, i32) {
    %c0_i32 = arith.constant 0 : i32
    %c0_i32_0 = arith.constant 0 : i32
    %c0_i32_1 = arith.constant 0 : i32
    return %c0_i32, %c0_i32_0 : i32, i32
  }
  func.func @transform_11(%arg0: i32) -> (i32, i32) {
    %c0_i32 = arith.constant 0 : i32
    %c0_i32_0 = arith.constant 0 : i32
    %c0_i32_1 = arith.constant 0 : i32
    return %c0_i32, %c0_i32_0 : i32, i32
  }
  func.func @transform_12(%arg0: i32) -> (i32, i32) {
    %c0_i32 = arith.constant 0 : i32
    %c0_i32_0 = arith.constant 0 : i32
    %c0_i32_1 = arith.constant 0 : i32
    return %c0_i32, %c0_i32_0 : i32, i32
  }
  func.func @transform_13(%arg0: i32) -> (i32, i32) {
    %c0_i32 = arith.constant 0 : i32
    %c0_i32_0 = arith.constant 0 : i32
    %c0_i32_1 = arith.constant 0 : i32
    return %c0_i32, %c0_i32_0 : i32, i32
  }
  func.func @transform_14(%arg0: i32) -> (i32, i32) {
    %c0_i32 = arith.constant 0 : i32
    %c0_i32_0 = arith.constant 0 : i32
    %c0_i32_1 = arith.constant 0 : i32
    return %c0_i32, %c0_i32_0 : i32, i32
  }
  func.func @transform_15(%arg0: i32) -> (i32, i32, i32) {
    %c0_i32 = arith.constant 0 : i32
    %c0_i32_0 = arith.constant 0 : i32
    %c0_i32_1 = arith.constant 0 : i32
    return %arg0, %c0_i32, %c0_i32_0 : i32, i32, i32
  }
}

</mosaic_0001>

<llo_original>
// kernel: tpu_custom_call.1
$region0: #{tpu_custom_call.1}
  #allocation0 [shape = 'u32[]', space=smem, size = 0x4, offset = 0x4, fixed_abs, tag = 'smem constant byte address 0x4 - core index']
  #allocation1 [shape = 'u32[144,128]{1,0:T(1,128)}', space=vmem, size = 0x12000, scoped, tag = 'internal scratch']
  %s0 = inlined_call_operand.hbm [shape: f32[4,8,128], index: 0, kind: input, shape index: {}]
  %s1 = inlined_call_operand.hbm [shape: f32[128,256], index: 1, kind: input, shape index: {}]
  %s2 = inlined_call_operand.vmem [shape: f32[1,128], index: 2, kind: input, shape index: {}]
  %s3 = inlined_call_operand.hbm [shape: f32[128,128], index: 3, kind: input, shape index: {}]
  %s4 = inlined_call_operand.vmem [shape: f32[1,128], index: 4, kind: input, shape index: {}]
  %s5 = inlined_call_operand.hbm [shape: f32[128,128], index: 5, kind: input, shape index: {}]
  %s6 = inlined_call_operand.vmem [shape: f32[1,128], index: 6, kind: input, shape index: {}]
  %s7 = inlined_call_operand.vmem [shape: f32[1,128], index: 7, kind: input, shape index: {}]
  %s8 = inlined_call_operand.vmem [shape: f32[1,128], index: 8, kind: input, shape index: {}]
  %s9 = inlined_call_operand.hbm [shape: f32[128,128], index: 9, kind: input, shape index: {}]
  %s10 = inlined_call_operand.vmem [shape: f32[1,128], index: 10, kind: input, shape index: {}]
  %s11 = inlined_call_operand.hbm [shape: f32[128,128], index: 11, kind: input, shape index: {}]
  %s12 = inlined_call_operand.vmem [shape: f32[1,128], index: 12, kind: input, shape index: {}]
  %s13 = inlined_call_operand.vmem [shape: f32[1,128], index: 13, kind: input, shape index: {}]
  %s14 = inlined_call_operand.vmem [shape: f32[1,128], index: 14, kind: input, shape index: {}]
  %s15 = inlined_call_operand.hbm [shape: f32[4,8,128], index: 15, kind: output, shape index: {}]
  %s16 = sld [smem:[#allocation0]]
  $region117: #{tpu_custom_call.1} parent=0
    _
  %s18 = ssub.s32 1, %s16
  %s19 = scalar_select 0, %s18, %s16
  $region1: #{tpu_custom_call.1} parent=0
    #allocation2 [shape = 'u8[16384]{0}', space=vmem, size = 0x4000, scoped, tag = 'input window, operand 0']
    #allocation3 [shape = 's32[2]{0}', space=sflag, size = 0x8, scoped, tag = 'scoped memory for tpu_custom_call.1']
    #allocation4 [shape = 's32[2]{0}', space=sflag, size = 0x8, scoped, tag = 'scoped memory for tpu_custom_call.1']
    #allocation5 [shape = 'u8[131072]{0}', space=vmem, size = 0x20000, scoped, tag = 'input window, operand 1, single buffered']
    #allocation6 [shape = 's32[1]{0}', space=sflag, size = 0x4, scoped, tag = 'scoped memory for tpu_custom_call.1']
    #allocation7 [shape = 'u8[65536]{0}', space=vmem, size = 0x10000, scoped, tag = 'input window, operand 3, single buffered']
    #allocation8 [shape = 'u8[65536]{0}', space=vmem, size = 0x10000, scoped, tag = 'input window, operand 5, single buffered']
    #allocation9 [shape = 's32[1]{0}', space=sflag, size = 0x4, scoped, tag = 'scoped memory for tpu_custom_call.1']
    #allocation10 [shape = 'u8[65536]{0}', space=vmem, size = 0x10000, scoped, tag = 'input window, operand 9, single buffered']
    #allocation11 [shape = 'u8[65536]{0}', space=vmem, size = 0x10000, scoped, tag = 'input window, operand 11, single buffered']
    #allocation12 [shape = 's32[1]{0}', space=sflag, size = 0x4, scoped, tag = 'scoped memory for tpu_custom_call.1']
    #allocation13 [shape = 'u8[16384]{0}', space=vmem, size = 0x4000, scoped, tag = 'output window, operand 0']
    %20 = vsyncpa [#allocation3], 0
    %s21 = scalar_lea.sflag [#allocation3], 1
    %22 = vsyncpa %s21, 0
    %23 = vsyncpa [#allocation6], 0
    %24 = vsyncpa [#allocation9], 0
    %25 = vsyncpa [#allocation12], 0
    %26 = vsyncpa [#allocation4], 0
    %s27 = scalar_lea.sflag [#allocation4], 1
    %28 = vsyncpa %s27, 0
    loop: start=0, step=1, limit=4
    $region2: #{tpu_custom_call.1} parent=1 // loop_pre_header
      _
    $region3: #{tpu_custom_call.1} parent=1 // loop_header
      %s30 = sphi 0, %s34
      %p31 = scmp.ge.s32.totalorder %s30, 4
      %s40 = sphi 0, %s42
      %s43 = sphi 0, %s40
      %s44 = sphi 0, %s43
      %s60 = sphi 0, %s44
      %s64 = sphi 0, %s64
      %s66 = sphi 0, %s64
      %s67 = sphi 0, %s66
      %s81 = sphi 0, %s67
      %s85 = sphi 0, %s85
      %s87 = sphi 0, %s85
      %s88 = sphi 0, %s87
      %s102 = sphi 0, %s88
      %s106 = sphi 0, %s106
      %s108 = sphi 0, %s106
      %s109 = sphi 0, %s108
      %s123 = sphi 0, %s109
      %s127 = sphi 0, %s127
      %s129 = sphi 0, %s127
      %s130 = sphi 0, %s129
      %s144 = sphi 0, %s130
      %s148 = sphi 0, %s148
      %s150 = sphi 0, %s148
      %s151 = sphi 0, %s150
      %s165 = sphi 0, %s151
      %s169 = sphi 0, %s169
      %s171 = sphi 0, %s169
      %s172 = sphi 0, %s171
      %s186 = sphi 0, %s172
      %s190 = sphi 0, %s190
      %s192 = sphi 0, %s190
      %s193 = sphi 0, %s192
      %s207 = sphi 0, %s193
      %s211 = sphi 0, %s211
      %s213 = sphi 0, %s211
      %s214 = sphi 0, %s213
      %s228 = sphi 0, %s214
      %s232 = sphi 0, %s232
      %s234 = sphi 0, %s232
      %s235 = sphi 0, %s234
      %s249 = sphi 0, %s235
      %s253 = sphi 0, %s253
      %s255 = sphi 0, %s253
      %s256 = sphi 0, %s255
      %s270 = sphi 0, %s256
      %s274 = sphi 0, %s274
      %s276 = sphi 0, %s274
      %s277 = sphi 0, %s276
      %s291 = sphi 0, %s277
      %s295 = sphi 0, %s295
      %s297 = sphi 0, %s295
      %s298 = sphi 0, %s297
      %s312 = sphi 0, %s298
      %s316 = sphi 0, %s316
      %s318 = sphi 0, %s316
      %s319 = sphi 0, %s318
      %s333 = sphi 0, %s319
      %s337 = sphi 0, %s337
      %s339 = sphi 0, %s337
      %s340 = sphi 0, %s339
      %s354 = sphi 0, %s340
      %s360 = sphi 0, %s362
      %s363 = sphi 0, %s360
      %s364 = sphi 0, %s363
      %s380 = sphi 0, %s364
    $region4: #{tpu_custom_call.1} parent=1 // loop_header_branch
      %33 = sbr.rel (%p31) target = $region8
    $region5: #{tpu_custom_call.1} parent=1 // loop_body
      %s35 = ssub.s32 %s30, 1
      %s36 = ssub.s32 %s30, 2
      %s37 = sadd.s32 %s30, 1
      %s38 = ssub.s32 %s30, %s37
      %p39 = scmp.eq.s32.totalorder %s38, 0
      %s41 = sadd.s32 %s40, 1
      %s42 = scalar_select %p39, %s40, %s41
      %p45 = pneg %p39
      %p46 = scmp.eq.s32.totalorder %s30, 1
      %p47 = por %p45, %p46
      %p48 = scmp.ne.s32.totalorder %s40, %s43
      %p49 = scmp.eq.s32.totalorder %s30, 0
      %p50 = por %p48, %p49
      %p51 = scmp.ne.s32.totalorder %s40, %s43
      %p52 = scmp.eq.s32.totalorder %s35, 1
      %p53 = por %p51, %p52
      %p54 = scmp.ne.s32.totalorder %s43, %s44
      %p55 = scmp.eq.s32.totalorder %s35, 0
      %p56 = por %p54, %p55
      %p57 = scmp.ne.s32.totalorder %s43, %s44
      %p58 = scmp.eq.s32.totalorder %s36, 1
      %p59 = por %p57, %p58
      %p61 = scmp.ne.s32.totalorder %s44, %s60
      %p62 = scmp.eq.s32.totalorder %s36, 0
      %p63 = por %p61, %p62
      %s65 = sadd.s32 %s64, 1
      %p68 = scmp.eq.s32.totalorder %s30, 1
      %p69 = scmp.ne.s32.totalorder %s64, %s66
      %p70 = scmp.eq.s32.totalorder %s30, 0
      %p71 = por %p69, %p70
      %p72 = scmp.ne.s32.totalorder %s64, %s66
      %p73 = scmp.eq.s32.totalorder %s35, 1
      %p74 = por %p72, %p73
      %p75 = scmp.ne.s32.totalorder %s66, %s67
      %p76 = scmp.eq.s32.totalorder %s35, 0
      %p77 = por %p75, %p76
      %p78 = scmp.ne.s32.totalorder %s66, %s67
      %p79 = scmp.eq.s32.totalorder %s36, 1
      %p80 = por %p78, %p79
      %p82 = scmp.ne.s32.totalorder %s67, %s81
      %p83 = scmp.eq.s32.totalorder %s36, 0
      %p84 = por %p82, %p83
      %s86 = sadd.s32 %s85, 1
      %p89 = scmp.eq.s32.totalorder %s30, 1
      %p90 = scmp.ne.s32.totalorder %s85, %s87
      %p91 = scmp.eq.s32.totalorder %s30, 0
      %p92 = por %p90, %p91
      %p93 = scmp.ne.s32.totalorder %s85, %s87
      %p94 = scmp.eq.s32.totalorder %s35, 1
      %p95 = por %p93, %p94
      %p96 = scmp.ne.s32.totalorder %s87, %s88
      %p97 = scmp.eq.s32.totalorder %s35, 0
      %p98 = por %p96, %p97
      %p99 = scmp.ne.s32.totalorder %s87, %s88
      %p100 = scmp.eq.s32.totalorder %s36, 1
      %p101 = por %p99, %p100
      %p103 = scmp.ne.s32.totalorder %s88, %s102
      %p104 = scmp.eq.s32.totalorder %s36, 0
      %p105 = por %p103, %p104
      %s107 = sadd.s32 %s106, 1
      %p110 = scmp.eq.s32.totalorder %s30, 1
      %p111 = scmp.ne.s32.totalorder %s106, %s108
      %p112 = scmp.eq.s32.totalorder %s30, 0
      %p113 = por %p111, %p112
      %p114 = scmp.ne.s32.totalorder %s106, %s108
      %p115 = scmp.eq.s32.totalorder %s35, 1
      %p116 = por %p114, %p115
      %p117 = scmp.ne.s32.totalorder %s108, %s109
      %p118 = scmp.eq.s32.totalorder %s35, 0
      %p119 = por %p117, %p118
      %p120 = scmp.ne.s32.totalorder %s108, %s109
      %p121 = scmp.eq.s32.totalorder %s36, 1
      %p122 = por %p120, %p121
      %p124 = scmp.ne.s32.totalorder %s109, %s123
      %p125 = scmp.eq.s32.totalorder %s36, 0
      %p126 = por %p124, %p125
      %s128 = sadd.s32 %s127, 1
      %p131 = scmp.eq.s32.totalorder %s30, 1
      %p132 = scmp.ne.s32.totalorder %s127, %s129
      %p133 = scmp.eq.s32.totalorder %s30, 0
      %p134 = por %p132, %p133
      %p135 = scmp.ne.s32.totalorder %s127, %s129
      %p136 = scmp.eq.s32.totalorder %s35, 1
      %p137 = por %p135, %p136
      %p138 = scmp.ne.s32.totalorder %s129, %s130
      %p139 = scmp.eq.s32.totalorder %s35, 0
      %p140 = por %p138, %p139
      %p141 = scmp.ne.s32.totalorder %s129, %s130
      %p142 = scmp.eq.s32.totalorder %s36, 1
      %p143 = por %p141, %p142
      %p145 = scmp.ne.s32.totalorder %s130, %s144
      %p146 = scmp.eq.s32.totalorder %s36, 0
      %p147 = por %p145, %p146
      %s149 = sadd.s32 %s148, 1
      %p152 = scmp.eq.s32.totalorder %s30, 1
      %p153 = scmp.ne.s32.totalorder %s148, %s150
      %p154 = scmp.eq.s32.totalorder %s30, 0
      %p155 = por %p153, %p154
      %p156 = scmp.ne.s32.totalorder %s148, %s150
      %p157 = scmp.eq.s32.totalorder %s35, 1
      %p158 = por %p156, %p157
      %p159 = scmp.ne.s32.totalorder %s150, %s151
      %p160 = scmp.eq.s32.totalorder %s35, 0
      %p161 = por %p159, %p160
      %p162 = scmp.ne.s32.totalorder %s150, %s151
      %p163 = scmp.eq.s32.totalorder %s36, 1
      %p164 = por %p162, %p163
      %p166 = scmp.ne.s32.totalorder %s151, %s165
      %p167 = scmp.eq.s32.totalorder %s36, 0
      %p168 = por %p166, %p167
      %s170 = sadd.s32 %s169, 1
      %p173 = scmp.eq.s32.totalorder %s30, 1
      %p174 = scmp.ne.s32.totalorder %s169, %s171
      %p175 = scmp.eq.s32.totalorder %s30, 0
      %p176 = por %p174, %p175
      %p177 = scmp.ne.s32.totalorder %s169, %s171
      %p178 = scmp.eq.s32.totalorder %s35, 1
      %p179 = por %p177, %p178
      %p180 = scmp.ne.s32.totalorder %s171, %s172
      %p181 = scmp.eq.s32.totalorder %s35, 0
      %p182 = por %p180, %p181
      %p183 = scmp.ne.s32.totalorder %s171, %s172
      %p184 = scmp.eq.s32.totalorder %s36, 1
      %p185 = por %p183, %p184
      %p187 = scmp.ne.s32.totalorder %s172, %s186
      %p188 = scmp.eq.s32.totalorder %s36, 0
      %p189 = por %p187, %p188
      %s191 = sadd.s32 %s190, 1
      %p194 = scmp.eq.s32.totalorder %s30, 1
      %p195 = scmp.ne.s32.totalorder %s190, %s192
      %p196 = scmp.eq.s32.totalorder %s30, 0
      %p197 = por %p195, %p196
      %p198 = scmp.ne.s32.totalorder %s190, %s192
      %p199 = scmp.eq.s32.totalorder %s35, 1
      %p200 = por %p198, %p199
      %p201 = scmp.ne.s32.totalorder %s192, %s193
      %p202 = scmp.eq.s32.totalorder %s35, 0
      %p203 = por %p201, %p202
      %p204 = scmp.ne.s32.totalorder %s192, %s193
      %p205 = scmp.eq.s32.totalorder %s36, 1
      %p206 = por %p204, %p205
      %p208 = scmp.ne.s32.totalorder %s193, %s207
      %p209 = scmp.eq.s32.totalorder %s36, 0
      %p210 = por %p208, %p209
      %s212 = sadd.s32 %s211, 1
      %p215 = scmp.eq.s32.totalorder %s30, 1
      %p216 = scmp.ne.s32.totalorder %s211, %s213
      %p217 = scmp.eq.s32.totalorder %s30, 0
      %p218 = por %p216, %p217
      %p219 = scmp.ne.s32.totalorder %s211, %s213
      %p220 = scmp.eq.s32.totalorder %s35, 1
      %p221 = por %p219, %p220
      %p222 = scmp.ne.s32.totalorder %s213, %s214
      %p223 = scmp.eq.s32.totalorder %s35, 0
      %p224 = por %p222, %p223
      %p225 = scmp.ne.s32.totalorder %s213, %s214
      %p226 = scmp.eq.s32.totalorder %s36, 1
      %p227 = por %p225, %p226
      %p229 = scmp.ne.s32.totalorder %s214, %s228
      %p230 = scmp.eq.s32.totalorder %s36, 0
      %p231 = por %p229, %p230
      %s233 = sadd.s32 %s232, 1
      %p236 = scmp.eq.s32.totalorder %s30, 1
      %p237 = scmp.ne.s32.totalorder %s232, %s234
      %p238 = scmp.eq.s32.totalorder %s30, 0
      %p239 = por %p237, %p238
      %p240 = scmp.ne.s32.totalorder %s232, %s234
      %p241 = scmp.eq.s32.totalorder %s35, 1
      %p242 = por %p240, %p241
      %p243 = scmp.ne.s32.totalorder %s234, %s235
      %p244 = scmp.eq.s32.totalorder %s35, 0
      %p245 = por %p243, %p244
      %p246 = scmp.ne.s32.totalorder %s234, %s235
      %p247 = scmp.eq.s32.totalorder %s36, 1
      %p248 = por %p246, %p247
      %p250 = scmp.ne.s32.totalorder %s235, %s249
      %p251 = scmp.eq.s32.totalorder %s36, 0
      %p252 = por %p250, %p251
      %s254 = sadd.s32 %s253, 1
      %p257 = scmp.eq.s32.totalorder %s30, 1
      %p258 = scmp.ne.s32.totalorder %s253, %s255
      %p259 = scmp.eq.s32.totalorder %s30, 0
      %p260 = por %p258, %p259
      %p261 = scmp.ne.s32.totalorder %s253, %s255
      %p262 = scmp.eq.s32.totalorder %s35, 1
      %p263 = por %p261, %p262
      %p264 = scmp.ne.s32.totalorder %s255, %s256
      %p265 = scmp.eq.s32.totalorder %s35, 0
      %p266 = por %p264, %p265
      %p267 = scmp.ne.s32.totalorder %s255, %s256
      %p268 = scmp.eq.s32.totalorder %s36, 1
      %p269 = por %p267, %p268
      %p271 = scmp.ne.s32.totalorder %s256, %s270
      %p272 = scmp.eq.s32.totalorder %s36, 0
      %p273 = por %p271, %p272
      %s275 = sadd.s32 %s274, 1
      %p278 = scmp.eq.s32.totalorder %s30, 1
      %p279 = scmp.ne.s32.totalorder %s274, %s276
      %p280 = scmp.eq.s32.totalorder %s30, 0
      %p281 = por %p279, %p280
      %p282 = scmp.ne.s32.totalorder %s274, %s276
      %p283 = scmp.eq.s32.totalorder %s35, 1
      %p284 = por %p282, %p283
      %p285 = scmp.ne.s32.totalorder %s276, %s277
      %p286 = scmp.eq.s32.totalorder %s35, 0
      %p287 = por %p285, %p286
      %p288 = scmp.ne.s32.totalorder %s276, %s277
      %p289 = scmp.eq.s32.totalorder %s36, 1
      %p290 = por %p288, %p289
      %p292 = scmp.ne.s32.totalorder %s277, %s291
      %p293 = scmp.eq.s32.totalorder %s36, 0
      %p294 = por %p292, %p293
      %s296 = sadd.s32 %s295, 1
      %p299 = scmp.eq.s32.totalorder %s30, 1
      %p300 = scmp.ne.s32.totalorder %s295, %s297
      %p301 = scmp.eq.s32.totalorder %s30, 0
      %p302 = por %p300, %p301
      %p303 = scmp.ne.s32.totalorder %s295, %s297
      %p304 = scmp.eq.s32.totalorder %s35, 1
      %p305 = por %p303, %p304
      %p306 = scmp.ne.s32.totalorder %s297, %s298
      %p307 = scmp.eq.s32.totalorder %s35, 0
      %p308 = por %p306, %p307
      %p309 = scmp.ne.s32.totalorder %s297, %s298
      %p310 = scmp.eq.s32.totalorder %s36, 1
      %p311 = por %p309, %p310
      %p313 = scmp.ne.s32.totalorder %s298, %s312
      %p314 = scmp.eq.s32.totalorder %s36, 0
      %p315 = por %p313, %p314
      %s317 = sadd.s32 %s316, 1
      %p320 = scmp.eq.s32.totalorder %s30, 1
      %p321 = scmp.ne.s32.totalorder %s316, %s318
      %p322 = scmp.eq.s32.totalorder %s30, 0
      %p323 = por %p321, %p322
      %p324 = scmp.ne.s32.totalorder %s316, %s318
      %p325 = scmp.eq.s32.totalorder %s35, 1
      %p326 = por %p324, %p325
      %p327 = scmp.ne.s32.totalorder %s318, %s319
      %p328 = scmp.eq.s32.totalorder %s35, 0
      %p329 = por %p327, %p328
      %p330 = scmp.ne.s32.totalorder %s318, %s319
      %p331 = scmp.eq.s32.totalorder %s36, 1
      %p332 = por %p330, %p331
      %p334 = scmp.ne.s32.totalorder %s319, %s333
      %p335 = scmp.eq.s32.totalorder %s36, 0
      %p336 = por %p334, %p335
      %s338 = sadd.s32 %s337, 1
      %p341 = scmp.eq.s32.totalorder %s30, 1
      %p342 = scmp.ne.s32.totalorder %s337, %s339
      %p343 = scmp.eq.s32.totalorder %s30, 0
      %p344 = por %p342, %p343
      %p345 = scmp.ne.s32.totalorder %s337, %s339
      %p346 = scmp.eq.s32.totalorder %s35, 1
      %p347 = por %p345, %p346
      %p348 = scmp.ne.s32.totalorder %s339, %s340
      %p349 = scmp.eq.s32.totalorder %s35, 0
      %p350 = por %p348, %p349
      %p351 = scmp.ne.s32.totalorder %s339, %s340
      %p352 = scmp.eq.s32.totalorder %s36, 1
      %p353 = por %p351, %p352
      %p355 = scmp.ne.s32.totalorder %s340, %s354
      %p356 = scmp.eq.s32.totalorder %s36, 0
      %p357 = por %p355, %p356
      %s358 = ssub.s32 %s30, %s37
      %p359 = scmp.eq.s32.totalorder %s358, 0
      %s361 = sadd.s32 %s360, 1
      %s362 = scalar_select %p359, %s360, %s361
      %p365 = pneg %p359
      %p366 = scmp.eq.s32.totalorder %s30, 1
      %p367 = por %p365, %p366
      %p368 = scmp.ne.s32.totalorder %s360, %s363
      %p369 = scmp.eq.s32.totalorder %s30, 0
      %p370 = por %p368, %p369
      %p371 = scmp.ne.s32.totalorder %s360, %s363
      %p372 = scmp.eq.s32.totalorder %s35, 1
      %p373 = por %p371, %p372
      %p374 = scmp.ne.s32.totalorder %s363, %s364
      %p375 = scmp.eq.s32.totalorder %s35, 0
      %p376 = por %p374, %p375
      %p377 = scmp.ne.s32.totalorder %s363, %s364
      %p378 = scmp.eq.s32.totalorder %s36, 1
      %p379 = por %p377, %p378
      %p381 = scmp.ne.s32.totalorder %s364, %s380
      %p382 = scmp.eq.s32.totalorder %s36, 0
      %p383 = por %p381, %p382
      %p384 = scmp.le.s32.totalorder 1, %s30
      %p385 = scmp.lt.s32.totalorder %s30, 3
      %p386 = pnand %p384, %p385
      %p387 = pneg %p386
      // Predicated region
      $region9: #{tpu_custom_call.1} parent=5 // pred_check
        _
      $region10: #{tpu_custom_call.1} parent=5 // pred_check_branch
        %389 = sbr.rel (%p386) target = $region12
      $region11: #{tpu_custom_call.1} parent=5 // pred_region
        %s390 = ssub.s32 %s30, 1
        // Predicated region
        $region13: #{tpu_custom_call.1} parent=11 // pred_check
          %p391 = pneg %p77
        $region14: #{tpu_custom_call.1} parent=11 // pred_check_branch
          %393 = sbr.rel (%p391) target = $region16
        $region15: #{tpu_custom_call.1} parent=11 // pred_region
          %s395 = ssub.s32 4096, 4096
          %396 = vsyncadd [#allocation6], %s395
          %s397 = sshll.u32 [#allocation5], 4
          %s398 = int_to_ptr.vmem [resolvable:$true] %s397
          %403 = dma.hbm_to_vmem [thread:$0]  %s1, 4096, %s398, [#allocation6], 256, 256, 16
        $region16: #{tpu_custom_call.1} parent=11 // pred_fallthru
          _
        // Predicated region
        $region17: #{tpu_custom_call.1} parent=11 // pred_check
          %p404 = pneg %p98
        $region18: #{tpu_custom_call.1} parent=11 // pred_check_branch
          %406 = sbr.rel (%p404) target = $region20
        $region19: #{tpu_custom_call.1} parent=11 // pred_region
          _
        $region20: #{tpu_custom_call.1} parent=11 // pred_fallthru
          _
        // Predicated region
        $region21: #{tpu_custom_call.1} parent=11 // pred_check
          %p407 = pneg %p119
        $region22: #{tpu_custom_call.1} parent=11 // pred_check_branch
          %409 = sbr.rel (%p407) target = $region24
        $region23: #{tpu_custom_call.1} parent=11 // pred_region
          %s411 = ssub.s32 2048, 2048
          %412 = vsyncadd [#allocation6], %s411
          %s413 = sshll.u32 [#allocation7], 4
          %s414 = int_to_ptr.vmem [resolvable:$true] %s413
          %419 = dma.hbm_to_vmem [thread:$0]  %s3, 2048, %s414, [#allocation6], 128, 128, 8
        $region24: #{tpu_custom_call.1} parent=11 // pred_fallthru
          _
        // Predicated region
        $region25: #{tpu_custom_call.1} parent=11 // pred_check
          %p420 = pneg %p140
        $region26: #{tpu_custom_call.1} parent=11 // pred_check_branch
          %422 = sbr.rel (%p420) target = $region28
        $region27: #{tpu_custom_call.1} parent=11 // pred_region
          _
        $region28: #{tpu_custom_call.1} parent=11 // pred_fallthru
          _
        // Predicated region
        $region29: #{tpu_custom_call.1} parent=11 // pred_check
          %p423 = pneg %p161
        $region30: #{tpu_custom_call.1} parent=11 // pred_check_branch
          %425 = sbr.rel (%p423) target = $region32
        $region31: #{tpu_custom_call.1} parent=11 // pred_region
          %s427 = ssub.s32 2048, 2048
          %428 = vsyncadd [#allocation9], %s427
          %s429 = sshll.u32 [#allocation8], 4
          %s430 = int_to_ptr.vmem [resolvable:$true] %s429
          %435 = dma.hbm_to_vmem [thread:$0]  %s5, 2048, %s430, [#allocation9], 128, 128, 8
        $region32: #{tpu_custom_call.1} parent=11 // pred_fallthru
          _
        // Predicated region
        $region33: #{tpu_custom_call.1} parent=11 // pred_check
          %p436 = pneg %p182
        $region34: #{tpu_custom_call.1} parent=11 // pred_check_branch
          %438 = sbr.rel (%p436) target = $region36
        $region35: #{tpu_custom_call.1} parent=11 // pred_region
          _
        $region36: #{tpu_custom_call.1} parent=11 // pred_fallthru
          _
        // Predicated region
        $region37: #{tpu_custom_call.1} parent=11 // pred_check
          %p439 = pneg %p203
        $region38: #{tpu_custom_call.1} parent=11 // pred_check_branch
          %441 = sbr.rel (%p439) target = $region40
        $region39: #{tpu_custom_call.1} parent=11 // pred_region
          _
        $region40: #{tpu_custom_call.1} parent=11 // pred_fallthru
          _
        // Predicated region
        $region41: #{tpu_custom_call.1} parent=11 // pred_check
          %p442 = pneg %p224
        $region42: #{tpu_custom_call.1} parent=11 // pred_check_branch
          %444 = sbr.rel (%p442) target = $region44
        $region43: #{tpu_custom_call.1} parent=11 // pred_region
          _
        $region44: #{tpu_custom_call.1} parent=11 // pred_fallthru
          _
        // Predicated region
        $region45: #{tpu_custom_call.1} parent=11 // pred_check
          %p445 = pneg %p245
        $region46: #{tpu_custom_call.1} parent=11 // pred_check_branch
          %447 = sbr.rel (%p445) target = $region48
        $region47: #{tpu_custom_call.1} parent=11 // pred_region
          %s449 = ssub.s32 2048, 2048
          %450 = vsyncadd [#allocation9], %s449
          %s451 = sshll.u32 [#allocation10], 4
          %s452 = int_to_ptr.vmem [resolvable:$true] %s451
          %457 = dma.hbm_to_vmem [thread:$0]  %s9, 2048, %s452, [#allocation9], 128, 128, 8
        $region48: #{tpu_custom_call.1} parent=11 // pred_fallthru
          _
        // Predicated region
        $region49: #{tpu_custom_call.1} parent=11 // pred_check
          %p458 = pneg %p266
        $region50: #{tpu_custom_call.1} parent=11 // pred_check_branch
          %460 = sbr.rel (%p458) target = $region52
        $region51: #{tpu_custom_call.1} parent=11 // pred_region
          _
        $region52: #{tpu_custom_call.1} parent=11 // pred_fallthru
          _
        // Predicated region
        $region53: #{tpu_custom_call.1} parent=11 // pred_check
          %p461 = pneg %p287
        $region54: #{tpu_custom_call.1} parent=11 // pred_check_branch
          %463 = sbr.rel (%p461) target = $region56
        $region55: #{tpu_custom_call.1} parent=11 // pred_region
          %s465 = ssub.s32 2048, 2048
          %466 = vsyncadd [#allocation12], %s465
          %s467 = sshll.u32 [#allocation11], 4
          %s468 = int_to_ptr.vmem [resolvable:$true] %s467
          %473 = dma.hbm_to_vmem [thread:$0]  %s11, 2048, %s468, [#allocation12], 128, 128, 8
        $region56: #{tpu_custom_call.1} parent=11 // pred_fallthru
          _
        // Predicated region
        $region57: #{tpu_custom_call.1} parent=11 // pred_check
          %p474 = pneg %p308
        $region58: #{tpu_custom_call.1} parent=11 // pred_check_branch
          %476 = sbr.rel (%p474) target = $region60
        $region59: #{tpu_custom_call.1} parent=11 // pred_region
          _
        $region60: #{tpu_custom_call.1} parent=11 // pred_fallthru
          _
        // Predicated region
        $region61: #{tpu_custom_call.1} parent=11 // pred_check
          %p477 = pneg %p329
        $region62: #{tpu_custom_call.1} parent=11 // pred_check_branch
          %479 = sbr.rel (%p477) target = $region64
        $region63: #{tpu_custom_call.1} parent=11 // pred_region
          _
        $region64: #{tpu_custom_call.1} parent=11 // pred_fallthru
          _
        // Predicated region
        $region65: #{tpu_custom_call.1} parent=11 // pred_check
          %p480 = pneg %p350
        $region66: #{tpu_custom_call.1} parent=11 // pred_check_branch
          %482 = sbr.rel (%p480) target = $region68
        $region67: #{tpu_custom_call.1} parent=11 // pred_region
          _
        $region68: #{tpu_custom_call.1} parent=11 // pred_fallthru
          _
      $region12: #{tpu_custom_call.1} parent=5 // pred_fallthru
        _
      %p483 = scmp.lt.s32.totalorder %s30, 2
      // Predicated region
      $region69: #{tpu_custom_call.1} parent=5 // pred_check
        %p484 = pneg %p483
      $region70: #{tpu_custom_call.1} parent=5 // pred_check_branch
        %486 = sbr.rel (%p484) target = $region72
      $region71: #{tpu_custom_call.1} parent=5 // pred_region
        // Predicated region
        $region73: #{tpu_custom_call.1} parent=71 // pred_check
          %p487 = pneg %p50
        $region74: #{tpu_custom_call.1} parent=71 // pred_check_branch
          %489 = sbr.rel (%p487) target = $region76
        $region75: #{tpu_custom_call.1} parent=71 // pred_region
          %s490 = sand.u32 %s40, 1
          %s491 = scalar_lea.sflag [#allocation3], %s490
          %s492 = sand.u32 %s40, 1
          %s493 = smul.addr %s492, 16
          %s494 = scalar_lea.vmem [#allocation2], %s493
          %s495 = smul.u32 2, %s30
          %s497 = ssub.s32 256, 256
          %498 = vsyncadd %s491, %s497
          %s499 = smul.addr %s495, 128
          %s500 = scalar_lea.hbm %s0, %s499
          %s501 = sshll.u32 %s494, 4
          %s502 = int_to_ptr.vmem [resolvable:$true] %s501
          %507 = dma.hbm_to_vmem [thread:$0]  %s500, 256, %s502, %s491, 128, 128, 8
        $region76: #{tpu_custom_call.1} parent=71 // pred_fallthru
          _
      $region72: #{tpu_custom_call.1} parent=5 // pred_fallthru
        _
      %p508 = scmp.le.s32.totalorder 1, %s30
      %p509 = scmp.lt.s32.totalorder %s30, 3
      %p510 = pnand %p508, %p509
      %p511 = pneg %p510
      // Predicated region
      $region77: #{tpu_custom_call.1} parent=5 // pred_check
        _
      $region78: #{tpu_custom_call.1} parent=5 // pred_check_branch
        %513 = sbr.rel (%p510) target = $region80
      $region79: #{tpu_custom_call.1} parent=5 // pred_region
        %s514 = ssub.s32 %s30, 1
        %s515 = sand.u32 %s43, 1
        %s516 = scalar_lea.sflag [#allocation3], %s515
        %s517 = sand.u32 %s43, 1
        %s518 = smul.addr %s517, 16
        %s519 = scalar_lea.vmem [#allocation2], %s518
        // Predicated region
        $region81: #{tpu_custom_call.1} parent=79 // pred_check
          %p520 = pneg %p56
        $region82: #{tpu_custom_call.1} parent=79 // pred_check_branch
          %522 = sbr.rel (%p520) target = $region84
        $region83: #{tpu_custom_call.1} parent=79 // pred_region
          %523 = dma.done %s516, 256
        $region84: #{tpu_custom_call.1} parent=79 // pred_fallthru
          _
        // Predicated region
        $region85: #{tpu_custom_call.1} parent=79 // pred_check
          %p524 = pneg %p77
        $region86: #{tpu_custom_call.1} parent=79 // pred_check_branch
          %526 = sbr.rel (%p524) target = $region88
        $region87: #{tpu_custom_call.1} parent=79 // pred_region
          %527 = dma.done [#allocation6], 4096
        $region88: #{tpu_custom_call.1} parent=79 // pred_fallthru
          _
        // Predicated region
        $region89: #{tpu_custom_call.1} parent=79 // pred_check
          %p528 = pneg %p119
        $region90: #{tpu_custom_call.1} parent=79 // pred_check_branch
          %530 = sbr.rel (%p528) target = $region92
        $region91: #{tpu_custom_call.1} parent=79 // pred_region
          %531 = dma.done [#allocation6], 2048
        $region92: #{tpu_custom_call.1} parent=79 // pred_fallthru
          _
        // Predicated region
        $region93: #{tpu_custom_call.1} parent=79 // pred_check
          %p532 = pneg %p161
        $region94: #{tpu_custom_call.1} parent=79 // pred_check_branch
          %534 = sbr.rel (%p532) target = $region96
        $region95: #{tpu_custom_call.1} parent=79 // pred_region
          %535 = dma.done [#allocation9], 2048
        $region96: #{tpu_custom_call.1} parent=79 // pred_fallthru
          _
        // Predicated region
        $region97: #{tpu_custom_call.1} parent=79 // pred_check
          %p536 = pneg %p245
        $region98: #{tpu_custom_call.1} parent=79 // pred_check_branch
          %538 = sbr.rel (%p536) target = $region100
        $region99: #{tpu_custom_call.1} parent=79 // pred_region
          %539 = dma.done [#allocation9], 2048
        $region100: #{tpu_custom_call.1} parent=79 // pred_fallthru
          _
        // Predicated region
        $region101: #{tpu_custom_call.1} parent=79 // pred_check
          %p540 = pneg %p287
        $region102: #{tpu_custom_call.1} parent=79 // pred_check_branch
          %542 = sbr.rel (%p540) target = $region104
        $region103: #{tpu_custom_call.1} parent=79 // pred_region
          %543 = dma.done [#allocation12], 2048
        $region104: #{tpu_custom_call.1} parent=79 // pred_fallthru
          _
        %s544 = sand.u32 %s43, 1
        %s545 = scalar_lea.sflag [#allocation3], %s544
        %s546 = sand.u32 %s43, 1
        %s547 = smul.addr %s546, 16
        %s548 = scalar_lea.vmem [#allocation2], %s547
        %p549 = pneg %p56
        %p550 = pneg %p53
        %p551 = pneg %p77
        %p552 = pneg %p74
        %p553 = pneg %p98
        %p554 = pneg %p95
        %p555 = pneg %p119
        %p556 = pneg %p116
        %p557 = pneg %p140
        %p558 = pneg %p137
        %p559 = pneg %p161
        %p560 = pneg %p158
        %p561 = pneg %p182
        %p562 = pneg %p179
        %p563 = pneg %p203
        %p564 = pneg %p200
        %p565 = pneg %p224
        %p566 = pneg %p221
        %p567 = pneg %p245
        %p568 = pneg %p242
        %p569 = pneg %p266
        %p570 = pneg %p263
        %p571 = pneg %p287
        %p572 = pneg %p284
        %p573 = pneg %p308
        %p574 = pneg %p305
        %p575 = pneg %p329
        %p576 = pneg %p326
        %p577 = pneg %p350
        %p578 = pneg %p347
        %p579 = pneg %p376
        %p580 = pneg %p373
        %s581 = sand.u32 %s363, 1
        %s582 = scalar_lea.sflag [#allocation4], %s581
        %s583 = sand.u32 %s363, 1
        %s584 = smul.addr %s583, 16
        %s585 = scalar_lea.vmem [#allocation13], %s584
        %s586 = smul.u32 2, %s35
        %s587 = smul.u32 2, %s35
        %v588 = vld [vmem:[%s519] sm:$0xff]
        %v589 = vld [vmem:[%s519 + $0x8] sm:$0xff]
        %v590 = vld [vmem:[#allocation5] sm:$0xff]
        %v591 = vld [vmem:[#allocation5 + $0x8] sm:$0xff]
        %v592 = vld [vmem:[#allocation5 + $0x10] sm:$0xff]
        %v593 = vld [vmem:[#allocation5 + $0x18] sm:$0xff]
        %v594 = vld [vmem:[#allocation5 + $0x20] sm:$0xff]
        %v595 = vld [vmem:[#allocation5 + $0x28] sm:$0xff]
        %v596 = vld [vmem:[#allocation5 + $0x30] sm:$0xff]
        %v597 = vld [vmem:[#allocation5 + $0x38] sm:$0xff]
        %v598 = vld [vmem:[#allocation5 + $0x40] sm:$0xff]
        %v599 = vld [vmem:[#allocation5 + $0x48] sm:$0xff]
        %v600 = vld [vmem:[#allocation5 + $0x50] sm:$0xff]
        %v601 = vld [vmem:[#allocation5 + $0x58] sm:$0xff]
        %v602 = vld [vmem:[#allocation5 + $0x60] sm:$0xff]
        %v603 = vld [vmem:[#allocation5 + $0x68] sm:$0xff]
        %v604 = vld [vmem:[#allocation5 + $0x70] sm:$0xff]
        %v605 = vld [vmem:[#allocation5 + $0x78] sm:$0xff]
        %v606 = vld [vmem:[#allocation5 + $0x80] sm:$0xff]
        %v607 = vld [vmem:[#allocation5 + $0x88] sm:$0xff]
        %v608 = vld [vmem:[#allocation5 + $0x90] sm:$0xff]
        %v609 = vld [vmem:[#allocation5 + $0x98] sm:$0xff]
        %v610 = vld [vmem:[#allocation5 + $0xa0] sm:$0xff]
        %v611 = vld [vmem:[#allocation5 + $0xa8] sm:$0xff]
        %v612 = vld [vmem:[#allocation5 + $0xb0] sm:$0xff]
        %v613 = vld [vmem:[#allocation5 + $0xb8] sm:$0xff]
        %v614 = vld [vmem:[#allocation5 + $0xc0] sm:$0xff]
        %v615 = vld [vmem:[#allocation5 + $0xc8] sm:$0xff]
        %v616 = vld [vmem:[#allocation5 + $0xd0] sm:$0xff]
        %v617 = vld [vmem:[#allocation5 + $0xd8] sm:$0xff]
        %v618 = vld [vmem:[#allocation5 + $0xe0] sm:$0xff]
        %v619 = vld [vmem:[#allocation5 + $0xe8] sm:$0xff]
        %v620 = vld [vmem:[#allocation5 + $0xf0] sm:$0xff]
        %v621 = vld [vmem:[#allocation5 + $0xf8] sm:$0xff]
        %622 = vmatprep.subr.mxu0 %v621
        %623 = vmatpush1.msra.mxu0 %v620
        %624 = vmatprep.subr.mxu0 %v619
        %625 = vmatpush1.msra.mxu0 %v618
        %626 = vmatprep.subr.mxu0 %v617
        %627 = vmatpush1.msra.mxu0 %v616
        %628 = vmatprep.subr.mxu0 %v615
        %629 = vmatpush1.msra.mxu0 %v614
        %630 = vmatprep.subr.mxu0 %v613
        %631 = vmatpush1.msra.mxu0 %v612
        %632 = vmatprep.subr.mxu0 %v611
        %633 = vmatpush1.msra.mxu0 %v610
        %634 = vmatprep.subr.mxu0 %v609
        %635 = vmatpush1.msra.mxu0 %v608
        %636 = vmatprep.subr.mxu0 %v607
        %637 = vmatpush1.msra.mxu0 %v606
        %638 = vmatprep.subr.mxu0 %v605
        %639 = vmatpush1.msra.mxu0 %v604
        %640 = vmatprep.subr.mxu0 %v603
        %641 = vmatpush1.msra.mxu0 %v602
        %642 = vmatprep.subr.mxu0 %v601
        %643 = vmatpush1.msra.mxu0 %v600
        %644 = vmatprep.subr.mxu0 %v599
        %645 = vmatpush1.msra.mxu0 %v598
        %646 = vmatprep.subr.mxu0 %v597
        %647 = vmatpush1.msra.mxu0 %v596
        %648 = vmatprep.subr.mxu0 %v595
        %649 = vmatpush1.msra.mxu0 %v594
        %650 = vmatprep.subr.mxu0 %v593
        %651 = vmatpush1.msra.mxu0 %v592
        %652 = vmatprep.subr.mxu0 %v591
        %653 = vmatpush1.msra.mxu0 %v590
        %654 = vmatprep.subr.mxu0 0.0
        %655 = vmatpush2.msra.mxu0 0.0
        %656 = vmatprep.subr.mxu0 0.0
        %657 = vmatpush2.msra.mxu0 0.0
        %658 = vmatprep.subr.mxu0 0.0
        %659 = vmatpush2.msra.mxu0 0.0
        %660 = vmatprep.subr.mxu0 0.0
        %661 = vmatpush2.msra.mxu0 0.0
        %662 = vmatprep.subr.mxu0 0.0
        %663 = vmatpush2.msra.mxu0 0.0
        %664 = vmatprep.subr.mxu0 0.0
        %665 = vmatpush2.msra.mxu0 0.0
        %666 = vmatprep.subr.mxu0 0.0
        %667 = vmatpush2.msra.mxu0 0.0
        %668 = vmatprep.subr.mxu0 0.0
        %669 = vmatpush2.msra.mxu0 0.0
        %670 = vmatprep.subr.mxu0 0.0
        %671 = vmatpush2.msra.mxu0 0.0
        %672 = vmatprep.subr.mxu0 0.0
        %673 = vmatpush2.msra.mxu0 0.0
        %674 = vmatprep.subr.mxu0 0.0
        %675 = vmatpush2.msra.mxu0 0.0
        %676 = vmatprep.subr.mxu0 0.0
        %677 = vmatpush2.msra.mxu0 0.0
        %678 = vmatprep.subr.mxu0 0.0
        %679 = vmatpush2.msra.mxu0 0.0
        %680 = vmatprep.subr.mxu0 0.0
        %681 = vmatpush2.msra.mxu0 0.0
        %682 = vmatprep.subr.mxu0 0.0
        %683 = vmatpush2.msra.mxu0 0.0
        %684 = vmatprep.subr.mxu0 0.0
        %685 = vmatpush2.msra.mxu0 0.0
        %686 = vmatprep.mubr.f32.mxu0 0.0
        %687 = vmatmul.mubr.f32.gmra.mxu0 %v588
        %v688 = vpop.f32.mrf.mxu0
        %v689 = vadd.f32 0.0, %v688
        %v690 = vpop.f32.mrf.mxu0
        %v691 = vadd.f32 0.0, %v690
        %692 = vmatprep.mubr.f32.mxu0 0.0
        %693 = vmatmul.mubr.f32.gmra.mxu0 %v589
        %v694 = vpop.f32.mrf.mxu0
        %v695 = vadd.f32 0.0, %v694
        %v696 = vpop.f32.mrf.mxu0
        %v697 = vadd.f32 0.0, %v696
        %698 = vdwg.mxu0
        %v699 = vld [vmem:[%s2] sm:$0x1]
        %v701 = vlaneseq
        %v702 = vshrl.u32 %v701, 7
        %v703 = vsub.s32 0, %v702
        %v704 = vrot.slane %v699, %v703
        %v706 = vadd.f32 %v689, %v704
        %v707 = vadd.f32 %v695, %v704
        %v708 = vtanh.pop %v706
        %v709 = vtanh.pop %v707
        %v710 = vrot.slane %v708, 4
        %v711 = vmax.f32 %v708, %v710
        %v712 = vrot.slane %v711, 2
        %v713 = vmax.f32 %v711, %v712
        %v714 = vrot.slane %v713, 1
        %v715 = vmax.f32 %v713, %v714
        %v716 = vrot.slane %v709, 4
        %v717 = vmax.f32 %v709, %v716
        %v718 = vrot.slane %v717, 2
        %v719 = vmax.f32 %v717, %v718
        %v720 = vrot.slane %v719, 1
        %v721 = vmax.f32 %v719, %v720
        %v722 = vsub.f32 %v708, %v715
        %v723 = vsub.f32 %v709, %v721
        %v724 = vmul.f32 %v722, 1.442695
        %v725 = vpow.pop %v724
        %v726 = vmul.f32 %v723, 1.442695
        %v727 = vpow.pop %v726
        %v728 = vmul.f32 %v708, %v725
        %v729 = vmul.f32 %v709, %v727
        %v730 = vrot.slane %v728, 4
        %v731 = vadd.f32 %v728, %v730
        %v732 = vrot.slane %v731, 2
        %v733 = vadd.f32 %v731, %v732
        %v734 = vrot.slane %v733, 1
        %v735 = vadd.f32 %v733, %v734
        %v736 = vrot.slane %v729, 4
        %v737 = vadd.f32 %v729, %v736
        %v738 = vrot.slane %v737, 2
        %v739 = vadd.f32 %v737, %v738
        %v740 = vrot.slane %v739, 1
        %v741 = vadd.f32 %v739, %v740
        %v742 = vrot.slane %v725, 4
        %v743 = vadd.f32 %v725, %v742
        %v744 = vrot.slane %v743, 2
        %v745 = vadd.f32 %v743, %v744
        %v746 = vrot.slane %v745, 1
        %v747 = vadd.f32 %v745, %v746
        %v748 = vrot.slane %v727, 4
        %v749 = vadd.f32 %v727, %v748
        %v750 = vrot.slane %v749, 2
        %v751 = vadd.f32 %v749, %v750
        %v752 = vrot.slane %v751, 1
        %v753 = vadd.f32 %v751, %v752
        %v754 = vrcp.pop %v747
        %v755 = vrcp.pop %v753
        %v756 = vmul.f32 %v735, %v754
        %v757 = vmul.f32 %v741, %v755
        %v758 = vld [vmem:[#allocation7] sm:$0xff]
        %v759 = vld [vmem:[#allocation7 + $0x8] sm:$0xff]
        %v760 = vld [vmem:[#allocation7 + $0x10] sm:$0xff]
        %v761 = vld [vmem:[#allocation7 + $0x18] sm:$0xff]
        %v762 = vld [vmem:[#allocation7 + $0x20] sm:$0xff]
        %v763 = vld [vmem:[#allocation7 + $0x28] sm:$0xff]
        %v764 = vld [vmem:[#allocation7 + $0x30] sm:$0xff]
        %v765 = vld [vmem:[#allocation7 + $0x38] sm:$0xff]
        %v766 = vld [vmem:[#allocation7 + $0x40] sm:$0xff]
        %v767 = vld [vmem:[#allocation7 + $0x48] sm:$0xff]
        %v768 = vld [vmem:[#allocation7 + $0x50] sm:$0xff]
        %v769 = vld [vmem:[#allocation7 + $0x58] sm:$0xff]
        %v770 = vld [vmem:[#allocation7 + $0x60] sm:$0xff]
        %v771 = vld [vmem:[#allocation7 + $0x68] sm:$0xff]
        %v772 = vld [vmem:[#allocation7 + $0x70] sm:$0xff]
        %v773 = vld [vmem:[#allocation7 + $0x78] sm:$0xff]
        %vm776 = vcmask 1041409
        %v777 = vsel %vm776, %v757, %v756
        %779 = vmatprep.subr.mxu0 0.0
        %780 = vmatpush1.msra.mxu0 %v773
        %781 = vmatprep.subr.mxu0 0.0
        %782 = vmatpush1.msra.mxu0 %v772
        %783 = vmatprep.subr.mxu0 0.0
        %784 = vmatpush1.msra.mxu0 %v771
        %785 = vmatprep.subr.mxu0 0.0
        %786 = vmatpush1.msra.mxu0 %v770
        %787 = vmatprep.subr.mxu0 0.0
        %788 = vmatpush1.msra.mxu0 %v769
        %789 = vmatprep.subr.mxu0 0.0
        %790 = vmatpush1.msra.mxu0 %v768
        %791 = vmatprep.subr.mxu0 0.0
        %792 = vmatpush1.msra.mxu0 %v767
        %793 = vmatprep.subr.mxu0 0.0
        %794 = vmatpush1.msra.mxu0 %v766
        %795 = vmatprep.subr.mxu0 0.0
        %796 = vmatpush1.msra.mxu0 %v765
        %797 = vmatprep.subr.mxu0 0.0
        %798 = vmatpush1.msra.mxu0 %v764
        %799 = vmatprep.subr.mxu0 0.0
        %800 = vmatpush1.msra.mxu0 %v763
        %801 = vmatprep.subr.mxu0 0.0
        %802 = vmatpush1.msra.mxu0 %v762
        %803 = vmatprep.subr.mxu0 0.0
        %804 = vmatpush1.msra.mxu0 %v761
        %805 = vmatprep.subr.mxu0 0.0
        %806 = vmatpush1.msra.mxu0 %v760
        %807 = vmatprep.subr.mxu0 0.0
        %808 = vmatpush1.msra.mxu0 %v759
        %809 = vmatprep.subr.mxu0 0.0
        %810 = vmatpush1.msra.mxu0 %v758
        %811 = vmatprep.subr.mxu0 0.0
        %812 = vmatpush2.msra.mxu0 0.0
        %813 = vmatprep.subr.mxu0 0.0
        %814 = vmatpush2.msra.mxu0 0.0
        %815 = vmatprep.subr.mxu0 0.0
        %816 = vmatpush2.msra.mxu0 0.0
        %817 = vmatprep.subr.mxu0 0.0
        %818 = vmatpush2.msra.mxu0 0.0
        %819 = vmatprep.subr.mxu0 0.0
        %820 = vmatpush2.msra.mxu0 0.0
        %821 = vmatprep.subr.mxu0 0.0
        %822 = vmatpush2.msra.mxu0 0.0
        %823 = vmatprep.subr.mxu0 0.0
        %824 = vmatpush2.msra.mxu0 0.0
        %825 = vmatprep.subr.mxu0 0.0
        %826 = vmatpush2.msra.mxu0 0.0
        %827 = vmatprep.subr.mxu0 0.0
        %828 = vmatpush2.msra.mxu0 0.0
        %829 = vmatprep.subr.mxu0 0.0
        %830 = vmatpush2.msra.mxu0 0.0
        %831 = vmatprep.subr.mxu0 0.0
        %832 = vmatpush2.msra.mxu0 0.0
        %833 = vmatprep.subr.mxu0 0.0
        %834 = vmatpush2.msra.mxu0 0.0
        %835 = vmatprep.subr.mxu0 0.0
        %836 = vmatpush2.msra.mxu0 0.0
        %837 = vmatprep.subr.mxu0 0.0
        %838 = vmatpush2.msra.mxu0 0.0
        %839 = vmatprep.subr.mxu0 0.0
        %840 = vmatpush2.msra.mxu0 0.0
        %841 = vmatprep.subr.mxu0 0.0
        %842 = vmatpush2.msra.mxu0 0.0
        %843 = vmatprep.mubr.f32.mxu0 0.0
        %844 = vmatmul.mubr.f32.gmra.mxu0 %v777
        %v845 = vpop.f32.mrf.mxu0
        %v846 = vadd.f32 0.0, %v845
        %v847 = vpop.f32.mrf.mxu0
        %848 = vdwg.mxu0
        %v851 = vunpack.c.l.s4 1966171168
        %v852 = vunpack.c.0.s8 %v851
        %v853 = vlaneseq
        %v854 = vshrl.u32 %v853, 7
        %v855 = vsub.s32 %v852, %v854
        %v856 = vrot.slane %v846, %v855
        %v857 = vcombine.high %v856, %v856
        %v859 = vunpack.c.l.s4 1966171168
        %v860 = vunpack.c.0.s8 %v859
        %v861 = vlaneseq
        %v862 = vshrl.u32 %v861, 7
        %v863 = vsub.s32 %v860, %v862
        %v864 = vrot.slane %v856, %v863
        %v866 = vunpack.c.l.s4 1966171168
        %v867 = vunpack.c.0.s8 %v866
        %v868 = vlaneseq
        %v869 = vshrl.u32 %v868, 7
        %v870 = vsub.s32 %v867, %v869
        %v871 = vrot.slane %v857, %v870
        %v872 = vlaneseq
        %v873 = vshrl.u32 %v872, 7
        %v874 = vsub.s32 0, %v873
        %v875 = vrot.slane %v864, %v874
        %v876 = vlaneseq
        %v877 = vshrl.u32 %v876, 7
        %v878 = vsub.s32 0, %v877
        %v879 = vrot.slane %v871, %v878
        %v882 = vadd.f32 %v691, %v875
        %v883 = vadd.f32 %v697, %v879
        %v884 = vld [vmem:[%s4] sm:$0x1]
        %v886 = vlaneseq
        %v887 = vshrl.u32 %v886, 7
        %v888 = vsub.s32 0, %v887
        %v889 = vrot.slane %v884, %v888
        %v891 = vadd.f32 %v882, %v889
        %v892 = vadd.f32 %v883, %v889
        %v893 = vtanh.pop %v891
        %v894 = vtanh.pop %v892
        %v895 = vld [vmem:[#allocation8] sm:$0xff]
        %v896 = vld [vmem:[#allocation8 + $0x8] sm:$0xff]
        %v897 = vld [vmem:[#allocation8 + $0x10] sm:$0xff]
        %v898 = vld [vmem:[#allocation8 + $0x18] sm:$0xff]
        %v899 = vld [vmem:[#allocation8 + $0x20] sm:$0xff]
        %v900 = vld [vmem:[#allocation8 + $0x28] sm:$0xff]
        %v901 = vld [vmem:[#allocation8 + $0x30] sm:$0xff]
        %v902 = vld [vmem:[#allocation8 + $0x38] sm:$0xff]
        %v903 = vld [vmem:[#allocation8 + $0x40] sm:$0xff]
        %v904 = vld [vmem:[#allocation8 + $0x48] sm:$0xff]
        %v905 = vld [vmem:[#allocation8 + $0x50] sm:$0xff]
        %v906 = vld [vmem:[#allocation8 + $0x58] sm:$0xff]
        %v907 = vld [vmem:[#allocation8 + $0x60] sm:$0xff]
        %v908 = vld [vmem:[#allocation8 + $0x68] sm:$0xff]
        %v909 = vld [vmem:[#allocation8 + $0x70] sm:$0xff]
        %v910 = vld [vmem:[#allocation8 + $0x78] sm:$0xff]
        %v911 = vld [vmem:[%s6] sm:$0x1]
        %v913 = vlaneseq
        %v914 = vshrl.u32 %v913, 7
        %v915 = vsub.s32 0, %v914
        %v916 = vrot.slane %v911, %v915
        %918 = vmatprep.subr.mxu0 0.0
        %919 = vmatpush1.msra.mxu0 %v910
        %920 = vmatprep.subr.mxu0 0.0
        %921 = vmatpush1.msra.mxu0 %v909
        %922 = vmatprep.subr.mxu0 0.0
        %923 = vmatpush1.msra.mxu0 %v908
        %924 = vmatprep.subr.mxu0 0.0
        %925 = vmatpush1.msra.mxu0 %v907
        %926 = vmatprep.subr.mxu0 0.0
        %927 = vmatpush1.msra.mxu0 %v906
        %928 = vmatprep.subr.mxu0 0.0
        %929 = vmatpush1.msra.mxu0 %v905
        %930 = vmatprep.subr.mxu0 0.0
        %931 = vmatpush1.msra.mxu0 %v904
        %932 = vmatprep.subr.mxu0 0.0
        %933 = vmatpush1.msra.mxu0 %v903
        %934 = vmatprep.subr.mxu0 0.0
        %935 = vmatpush1.msra.mxu0 %v902
        %936 = vmatprep.subr.mxu0 0.0
        %937 = vmatpush1.msra.mxu0 %v901
        %938 = vmatprep.subr.mxu0 0.0
        %939 = vmatpush1.msra.mxu0 %v900
        %940 = vmatprep.subr.mxu0 0.0
        %941 = vmatpush1.msra.mxu0 %v899
        %942 = vmatprep.subr.mxu0 0.0
        %943 = vmatpush1.msra.mxu0 %v898
        %944 = vmatprep.subr.mxu0 0.0
        %945 = vmatpush1.msra.mxu0 %v897
        %946 = vmatprep.subr.mxu0 0.0
        %947 = vmatpush1.msra.mxu0 %v896
        %948 = vmatprep.subr.mxu0 0.0
        %949 = vmatpush1.msra.mxu0 %v895
        %950 = vmatprep.subr.mxu0 0.0
        %951 = vmatpush2.msra.mxu0 0.0
        %952 = vmatprep.subr.mxu0 0.0
        %953 = vmatpush2.msra.mxu0 0.0
        %954 = vmatprep.subr.mxu0 0.0
        %955 = vmatpush2.msra.mxu0 0.0
        %956 = vmatprep.subr.mxu0 0.0
        %957 = vmatpush2.msra.mxu0 0.0
        %958 = vmatprep.subr.mxu0 0.0
        %959 = vmatpush2.msra.mxu0 0.0
        %960 = vmatprep.subr.mxu0 0.0
        %961 = vmatpush2.msra.mxu0 0.0
        %962 = vmatprep.subr.mxu0 0.0
        %963 = vmatpush2.msra.mxu0 0.0
        %964 = vmatprep.subr.mxu0 0.0
        %965 = vmatpush2.msra.mxu0 0.0
        %966 = vmatprep.subr.mxu0 0.0
        %967 = vmatpush2.msra.mxu0 0.0
        %968 = vmatprep.subr.mxu0 0.0
        %969 = vmatpush2.msra.mxu0 0.0
        %970 = vmatprep.subr.mxu0 0.0
        %971 = vmatpush2.msra.mxu0 0.0
        %972 = vmatprep.subr.mxu0 0.0
        %973 = vmatpush2.msra.mxu0 0.0
        %974 = vmatprep.subr.mxu0 0.0
        %975 = vmatpush2.msra.mxu0 0.0
        %976 = vmatprep.subr.mxu0 0.0
        %977 = vmatpush2.msra.mxu0 0.0
        %978 = vmatprep.subr.mxu0 0.0
        %979 = vmatpush2.msra.mxu0 0.0
        %980 = vmatprep.subr.mxu0 0.0
        %981 = vmatpush2.msra.mxu0 0.0
        %982 = vmatprep.mubr.f32.mxu0 0.0
        %983 = vmatmul.mubr.f32.gmra.mxu0 %v893
        %v984 = vpop.f32.mrf.mxu0
        %v985 = vadd.f32 %v916, %v984
        %v986 = vpop.f32.mrf.mxu0
        %987 = vmatprep.mubr.f32.mxu0 0.0
        %988 = vmatmul.mubr.f32.gmra.mxu0 %v894
        %v989 = vpop.f32.mrf.mxu0
        %v990 = vadd.f32 %v916, %v989
        %v991 = vpop.f32.mrf.mxu0
        %992 = vdwg.mxu0
        %v993 = vadd.f32 %v708, %v985
        %v994 = vadd.f32 %v709, %v990
        %995 = vadd.xlane.f32.xlu0 %v993
        %v996 = vpop.xlane.xlu0 %995
        %997 = vadd.xlane.f32.xlu0 %v994
        %v998 = vpop.xlane.xlu0 %997
        %v999 = vrcp.pop 128.0
        %v1000 = vmul.f32 %v996, %v999
        %v1001 = vmul.f32 %v998, %v999
        %v1002 = vsub.f32 %v993, %v1000
        %v1003 = vsub.f32 %v994, %v1001
        %v1004 = vmul.f32 %v1002, %v1002
        %v1005 = vmul.f32 %v1003, %v1003
        %1006 = vadd.xlane.f32.xlu0 %v1004
        %v1007 = vpop.xlane.xlu0 %1006
        %1008 = vadd.xlane.f32.xlu0 %v1005
        %v1009 = vpop.xlane.xlu0 %1008
        %v1010 = vmul.f32 %v1007, %v999
        %v1011 = vmul.f32 %v1009, %v999
        %v1012 = vadd.f32 %v1010, 1e-05
        %v1013 = vadd.f32 %v1011, 1e-05
        %v1014 = vrsqrt.pop %v1012
        %v1015 = vrsqrt.pop %v1013
        %v1016 = vmul.f32 %v1002, %v1014
        %v1017 = vmul.f32 %v1003, %v1015
        %v1018 = vld [vmem:[%s7] sm:$0x1]
        %v1020 = vlaneseq
        %v1021 = vshrl.u32 %v1020, 7
        %v1022 = vsub.s32 0, %v1021
        %v1023 = vrot.slane %v1018, %v1022
        %v1025 = vmul.f32 %v1016, %v1023
        %v1026 = vmul.f32 %v1017, %v1023
        %v1027 = vld [vmem:[%s8] sm:$0x1]
        %v1029 = vlaneseq
        %v1030 = vshrl.u32 %v1029, 7
        %v1031 = vsub.s32 0, %v1030
        %v1032 = vrot.slane %v1027, %v1031
        %v1034 = vadd.f32 %v1025, %v1032
        %v1035 = vadd.f32 %v1026, %v1032
        %v1036 = vld [vmem:[#allocation10] sm:$0xff]
        %v1037 = vld [vmem:[#allocation10 + $0x8] sm:$0xff]
        %v1038 = vld [vmem:[#allocation10 + $0x10] sm:$0xff]
        %v1039 = vld [vmem:[#allocation10 + $0x18] sm:$0xff]
        %v1040 = vld [vmem:[#allocation10 + $0x20] sm:$0xff]
        %v1041 = vld [vmem:[#allocation10 + $0x28] sm:$0xff]
        %v1042 = vld [vmem:[#allocation10 + $0x30] sm:$0xff]
        %v1043 = vld [vmem:[#allocation10 + $0x38] sm:$0xff]
        %v1044 = vld [vmem:[#allocation10 + $0x40] sm:$0xff]
        %v1045 = vld [vmem:[#allocation10 + $0x48] sm:$0xff]
        %v1046 = vld [vmem:[#allocation10 + $0x50] sm:$0xff]
        %v1047 = vld [vmem:[#allocation10 + $0x58] sm:$0xff]
        %v1048 = vld [vmem:[#allocation10 + $0x60] sm:$0xff]
        %v1049 = vld [vmem:[#allocation10 + $0x68] sm:$0xff]
        %v1050 = vld [vmem:[#allocation10 + $0x70] sm:$0xff]
        %v1051 = vld [vmem:[#allocation10 + $0x78] sm:$0xff]
        %v1052 = vld [vmem:[%s10] sm:$0x1]
        %v1054 = vlaneseq
        %v1055 = vshrl.u32 %v1054, 7
        %v1056 = vsub.s32 0, %v1055
        %v1057 = vrot.slane %v1052, %v1056
        %1059 = vmatprep.subr.mxu0 0.0
        %1060 = vmatpush1.msra.mxu0 %v1051
        %1061 = vmatprep.subr.mxu0 0.0
        %1062 = vmatpush1.msra.mxu0 %v1050
        %1063 = vmatprep.subr.mxu0 0.0
        %1064 = vmatpush1.msra.mxu0 %v1049
        %1065 = vmatprep.subr.mxu0 0.0
        %1066 = vmatpush1.msra.mxu0 %v1048
        %1067 = vmatprep.subr.mxu0 0.0
        %1068 = vmatpush1.msra.mxu0 %v1047
        %1069 = vmatprep.subr.mxu0 0.0
        %1070 = vmatpush1.msra.mxu0 %v1046
        %1071 = vmatprep.subr.mxu0 0.0
        %1072 = vmatpush1.msra.mxu0 %v1045
        %1073 = vmatprep.subr.mxu0 0.0
        %1074 = vmatpush1.msra.mxu0 %v1044
        %1075 = vmatprep.subr.mxu0 0.0
        %1076 = vmatpush1.msra.mxu0 %v1043
        %1077 = vmatprep.subr.mxu0 0.0
        %1078 = vmatpush1.msra.mxu0 %v1042
        %1079 = vmatprep.subr.mxu0 0.0
        %1080 = vmatpush1.msra.mxu0 %v1041
        %1081 = vmatprep.subr.mxu0 0.0
        %1082 = vmatpush1.msra.mxu0 %v1040
        %1083 = vmatprep.subr.mxu0 0.0
        %1084 = vmatpush1.msra.mxu0 %v1039
        %1085 = vmatprep.subr.mxu0 0.0
        %1086 = vmatpush1.msra.mxu0 %v1038
        %1087 = vmatprep.subr.mxu0 0.0
        %1088 = vmatpush1.msra.mxu0 %v1037
        %1089 = vmatprep.subr.mxu0 0.0
        %1090 = vmatpush1.msra.mxu0 %v1036
        %1091 = vmatprep.subr.mxu0 0.0
        %1092 = vmatpush2.msra.mxu0 0.0
        %1093 = vmatprep.subr.mxu0 0.0
        %1094 = vmatpush2.msra.mxu0 0.0
        %1095 = vmatprep.subr.mxu0 0.0
        %1096 = vmatpush2.msra.mxu0 0.0
        %1097 = vmatprep.subr.mxu0 0.0
        %1098 = vmatpush2.msra.mxu0 0.0
        %1099 = vmatprep.subr.mxu0 0.0
        %1100 = vmatpush2.msra.mxu0 0.0
        %1101 = vmatprep.subr.mxu0 0.0
        %1102 = vmatpush2.msra.mxu0 0.0
        %1103 = vmatprep.subr.mxu0 0.0
        %1104 = vmatpush2.msra.mxu0 0.0
        %1105 = vmatprep.subr.mxu0 0.0
        %1106 = vmatpush2.msra.mxu0 0.0
        %1107 = vmatprep.subr.mxu0 0.0
        %1108 = vmatpush2.msra.mxu0 0.0
        %1109 = vmatprep.subr.mxu0 0.0
        %1110 = vmatpush2.msra.mxu0 0.0
        %1111 = vmatprep.subr.mxu0 0.0
        %1112 = vmatpush2.msra.mxu0 0.0
        %1113 = vmatprep.subr.mxu0 0.0
        %1114 = vmatpush2.msra.mxu0 0.0
        %1115 = vmatprep.subr.mxu0 0.0
        %1116 = vmatpush2.msra.mxu0 0.0
        %1117 = vmatprep.subr.mxu0 0.0
        %1118 = vmatpush2.msra.mxu0 0.0
        %1119 = vmatprep.subr.mxu0 0.0
        %1120 = vmatpush2.msra.mxu0 0.0
        %1121 = vmatprep.subr.mxu0 0.0
        %1122 = vmatpush2.msra.mxu0 0.0
        %1123 = vmatprep.mubr.f32.mxu0 0.0
        %1124 = vmatmul.mubr.f32.gmra.mxu0 %v1034
        %v1125 = vpop.f32.mrf.mxu0
        %v1126 = vadd.f32 %v1057, %v1125
        %v1127 = vpop.f32.mrf.mxu0
        %1128 = vmatprep.mubr.f32.mxu0 0.0
        %1129 = vmatmul.mubr.f32.gmra.mxu0 %v1035
        %v1130 = vpop.f32.mrf.mxu0
        %v1131 = vadd.f32 %v1057, %v1130
        %v1132 = vpop.f32.mrf.mxu0
        %1133 = vdwg.mxu0
        %v1134 = vtanh.pop %v1126
        %v1135 = vtanh.pop %v1131
        %v1136 = vld [vmem:[#allocation11] sm:$0xff]
        %v1137 = vld [vmem:[#allocation11 + $0x8] sm:$0xff]
        %v1138 = vld [vmem:[#allocation11 + $0x10] sm:$0xff]
        %v1139 = vld [vmem:[#allocation11 + $0x18] sm:$0xff]
        %v1140 = vld [vmem:[#allocation11 + $0x20] sm:$0xff]
        %v1141 = vld [vmem:[#allocation11 + $0x28] sm:$0xff]
        %v1142 = vld [vmem:[#allocation11 + $0x30] sm:$0xff]
        %v1143 = vld [vmem:[#allocation11 + $0x38] sm:$0xff]
        %v1144 = vld [vmem:[#allocation11 + $0x40] sm:$0xff]
        %v1145 = vld [vmem:[#allocation11 + $0x48] sm:$0xff]
        %v1146 = vld [vmem:[#allocation11 + $0x50] sm:$0xff]
        %v1147 = vld [vmem:[#allocation11 + $0x58] sm:$0xff]
        %v1148 = vld [vmem:[#allocation11 + $0x60] sm:$0xff]
        %v1149 = vld [vmem:[#allocation11 + $0x68] sm:$0xff]
        %v1150 = vld [vmem:[#allocation11 + $0x70] sm:$0xff]
        %v1151 = vld [vmem:[#allocation11 + $0x78] sm:$0xff]
        %v1152 = vld [vmem:[%s12] sm:$0x1]
        %v1154 = vlaneseq
        %v1155 = vshrl.u32 %v1154, 7
        %v1156 = vsub.s32 0, %v1155
        %v1157 = vrot.slane %v1152, %v1156
        %1159 = vmatprep.subr.mxu0 0.0
        %1160 = vmatpush1.msra.mxu0 %v1151
        %1161 = vmatprep.subr.mxu0 0.0
        %1162 = vmatpush1.msra.mxu0 %v1150
        %1163 = vmatprep.subr.mxu0 0.0
        %1164 = vmatpush1.msra.mxu0 %v1149
        %1165 = vmatprep.subr.mxu0 0.0
        %1166 = vmatpush1.msra.mxu0 %v1148
        %1167 = vmatprep.subr.mxu0 0.0
        %1168 = vmatpush1.msra.mxu0 %v1147
        %1169 = vmatprep.subr.mxu0 0.0
        %1170 = vmatpush1.msra.mxu0 %v1146
        %1171 = vmatprep.subr.mxu0 0.0
        %1172 = vmatpush1.msra.mxu0 %v1145
        %1173 = vmatprep.subr.mxu0 0.0
        %1174 = vmatpush1.msra.mxu0 %v1144
        %1175 = vmatprep.subr.mxu0 0.0
        %1176 = vmatpush1.msra.mxu0 %v1143
        %1177 = vmatprep.subr.mxu0 0.0
        %1178 = vmatpush1.msra.mxu0 %v1142
        %1179 = vmatprep.subr.mxu0 0.0
        %1180 = vmatpush1.msra.mxu0 %v1141
        %1181 = vmatprep.subr.mxu0 0.0
        %1182 = vmatpush1.msra.mxu0 %v1140
        %1183 = vmatprep.subr.mxu0 0.0
        %1184 = vmatpush1.msra.mxu0 %v1139
        %1185 = vmatprep.subr.mxu0 0.0
        %1186 = vmatpush1.msra.mxu0 %v1138
        %1187 = vmatprep.subr.mxu0 0.0
        %1188 = vmatpush1.msra.mxu0 %v1137
        %1189 = vmatprep.subr.mxu0 0.0
        %1190 = vmatpush1.msra.mxu0 %v1136
        %1191 = vmatprep.subr.mxu0 0.0
        %1192 = vmatpush2.msra.mxu0 0.0
        %1193 = vmatprep.subr.mxu0 0.0
        %1194 = vmatpush2.msra.mxu0 0.0
        %1195 = vmatprep.subr.mxu0 0.0
        %1196 = vmatpush2.msra.mxu0 0.0
        %1197 = vmatprep.subr.mxu0 0.0
        %1198 = vmatpush2.msra.mxu0 0.0
        %1199 = vmatprep.subr.mxu0 0.0
        %1200 = vmatpush2.msra.mxu0 0.0
        %1201 = vmatprep.subr.mxu0 0.0
        %1202 = vmatpush2.msra.mxu0 0.0
        %1203 = vmatprep.subr.mxu0 0.0
        %1204 = vmatpush2.msra.mxu0 0.0
        %1205 = vmatprep.subr.mxu0 0.0
        %1206 = vmatpush2.msra.mxu0 0.0
        %1207 = vmatprep.subr.mxu0 0.0
        %1208 = vmatpush2.msra.mxu0 0.0
        %1209 = vmatprep.subr.mxu0 0.0
        %1210 = vmatpush2.msra.mxu0 0.0
        %1211 = vmatprep.subr.mxu0 0.0
        %1212 = vmatpush2.msra.mxu0 0.0
        %1213 = vmatprep.subr.mxu0 0.0
        %1214 = vmatpush2.msra.mxu0 0.0
        %1215 = vmatprep.subr.mxu0 0.0
        %1216 = vmatpush2.msra.mxu0 0.0
        %1217 = vmatprep.subr.mxu0 0.0
        %1218 = vmatpush2.msra.mxu0 0.0
        %1219 = vmatprep.subr.mxu0 0.0
        %1220 = vmatpush2.msra.mxu0 0.0
        %1221 = vmatprep.subr.mxu0 0.0
        %1222 = vmatpush2.msra.mxu0 0.0
        %1223 = vmatprep.mubr.f32.mxu0 0.0
        %1224 = vmatmul.mubr.f32.gmra.mxu0 %v1134
        %v1225 = vpop.f32.mrf.mxu0
        %v1226 = vadd.f32 %v1157, %v1225
        %v1227 = vpop.f32.mrf.mxu0
        %1228 = vmatprep.mubr.f32.mxu0 0.0
        %1229 = vmatmul.mubr.f32.gmra.mxu0 %v1135
        %v1230 = vpop.f32.mrf.mxu0
        %v1231 = vadd.f32 %v1157, %v1230
        %v1232 = vpop.f32.mrf.mxu0
        %1233 = vdwg.mxu0
        %v1234 = vadd.f32 %v1034, %v1226
        %v1235 = vadd.f32 %v1035, %v1231
        %1236 = vadd.xlane.f32.xlu0 %v1234
        %v1237 = vpop.xlane.xlu0 %1236
        %1238 = vadd.xlane.f32.xlu0 %v1235
        %v1239 = vpop.xlane.xlu0 %1238
        %v1240 = vmul.f32 %v1237, %v999
        %v1241 = vmul.f32 %v1239, %v999
        %v1242 = vsub.f32 %v1234, %v1240
        %v1243 = vsub.f32 %v1235, %v1241
        %v1244 = vmul.f32 %v1242, %v1242
        %v1245 = vmul.f32 %v1243, %v1243
        %1246 = vadd.xlane.f32.xlu0 %v1244
        %v1247 = vpop.xlane.xlu0 %1246
        %1248 = vadd.xlane.f32.xlu0 %v1245
        %v1249 = vpop.xlane.xlu0 %1248
        %v1250 = vmul.f32 %v1247, %v999
        %v1251 = vmul.f32 %v1249, %v999
        %v1252 = vadd.f32 %v1250, 1e-05
        %v1253 = vadd.f32 %v1251, 1e-05
        %v1254 = vrsqrt.pop %v1252
        %v1255 = vrsqrt.pop %v1253
        %v1256 = vmul.f32 %v1242, %v1254
        %v1257 = vmul.f32 %v1243, %v1255
        %v1258 = vld [vmem:[%s13] sm:$0x1]
        %v1260 = vlaneseq
        %v1261 = vshrl.u32 %v1260, 7
        %v1262 = vsub.s32 0, %v1261
        %v1263 = vrot.slane %v1258, %v1262
        %v1265 = vmul.f32 %v1256, %v1263
        %v1266 = vmul.f32 %v1257, %v1263
        %v1267 = vld [vmem:[%s14] sm:$0x1]
        %v1269 = vlaneseq
        %v1270 = vshrl.u32 %v1269, 7
        %v1271 = vsub.s32 0, %v1270
        %v1272 = vrot.slane %v1267, %v1271
        %v1274 = vadd.f32 %v1265, %v1272
        %v1275 = vadd.f32 %v1266, %v1272
        %1276 = vst [vmem:[%s585] sm:$0xff] %v1274
        %1277 = vst [vmem:[%s585 + $0x8] sm:$0xff] %v1275
        %s1278 = sand.u32 %s363, 1
        %s1279 = scalar_lea.sflag [#allocation4], %s1278
        %s1280 = sand.u32 %s363, 1
        %s1281 = smul.addr %s1280, 16
        %s1282 = scalar_lea.vmem [#allocation13], %s1281
        // Predicated region
        $region105: #{tpu_custom_call.1} parent=79 // pred_check
          %p1283 = pneg %p373
        $region106: #{tpu_custom_call.1} parent=79 // pred_check_branch
          %1285 = sbr.rel (%p1283) target = $region108
        $region107: #{tpu_custom_call.1} parent=79 // pred_region
          %s1286 = smul.u32 2, %s35
          %s1288 = ssub.s32 256, 256
          %1289 = vsyncadd %s1279, %s1288
          %s1290 = smul.addr %s1286, 128
          %s1291 = scalar_lea.hbm %s15, %s1290
          %s1292 = sshll.u32 %s1282, 4
          %s1293 = int_to_ptr.vmem [resolvable:$true] %s1292
          %1298 = dma.vmem_to_hbm [thread:$0]  %s1293, 256, %s1291, %s1279, 128, 128, 8
        $region108: #{tpu_custom_call.1} parent=79 // pred_fallthru
          _
      $region80: #{tpu_custom_call.1} parent=5 // pred_fallthru
        _
      %p1299 = scmp.le.s32.totalorder 2, %s30
      // Predicated region
      $region109: #{tpu_custom_call.1} parent=5 // pred_check
        %p1300 = pneg %p1299
      $region110: #{tpu_custom_call.1} parent=5 // pred_check_branch
        %1302 = sbr.rel (%p1300) target = $region112
      $region111: #{tpu_custom_call.1} parent=5 // pred_region
        %s1303 = ssub.s32 %s30, 2
        // Predicated region
        $region113: #{tpu_custom_call.1} parent=111 // pred_check
          %p1304 = pneg %p379
        $region114: #{tpu_custom_call.1} parent=111 // pred_check_branch
          %1306 = sbr.rel (%p1304) target = $region116
        $region115: #{tpu_custom_call.1} parent=111 // pred_region
          %s1307 = sand.u32 %s364, 1
          %s1308 = scalar_lea.sflag [#allocation4], %s1307
          %s1309 = sand.u32 %s364, 1
          %s1310 = smul.addr %s1309, 16
          %s1311 = scalar_lea.vmem [#allocation13], %s1310
          %1312 = dma.done %s1308, 256
        $region116: #{tpu_custom_call.1} parent=111 // pred_fallthru
          _
      $region112: #{tpu_custom_call.1} parent=5 // pred_fallthru
        _
    $region6: #{tpu_custom_call.1} parent=1 // loop_footer
      %s34 = sadd.s32 1, %s30
    $region7: #{tpu_custom_call.1} parent=1 // loop_footer_branch
      %29 = sbr.rel target = $region3
    $region8: #{tpu_custom_call.1} parent=1 // loop_exit
      _
    %1313 = vsyncpa [#allocation3], 1
    %s1314 = scalar_lea.sflag [#allocation3], 1
    %1315 = vsyncpa %s1314, 1
    %1316 = vsyncpa [#allocation6], 1
    %1317 = vsyncpa [#allocation9], 1
    %1318 = vsyncpa [#allocation12], 1
    %1319 = vsyncpa [#allocation4], 1
    %s1320 = scalar_lea.sflag [#allocation4], 1
    %1321 = vsyncpa %s1320, 1

</llo_original>
